<compile_context>
chip_gen: v7x
topology: tpu7x:2x2x1
jax: 0.10.0
libtpu: 0.0.40
codegen_flags: <defaults>
</compile_context>

<pallas_src>
import functools

import jax
import jax.numpy as jnp
from jax.experimental import pallas as pl
from jax.experimental.pallas import tpu as pltpu


NUM_ATOM_TYPE = 121
NUM_CHIRALITY_TAG = 11
NUM_BOND_TYPE = 7
NUM_BOND_DIRECTION = 3

LANE = 128      # lane-padded width holding both emb_dim and 2*emb_dim
EDGE_TAB = 16   # packed (bond-type | bond-direction) one-hot width (7 + 3 -> 16)


# ----------------------------------------------------------------------------
# Size / VMEM helpers (generation-aware)
# ----------------------------------------------------------------------------
def _round_up(a, b):
    return (a + b - 1) // b * b


def _vmem_capacity_bytes():
    try:
        info = pltpu.get_tpu_info()
        cap = getattr(info, "vmem_capacity_bytes", None)
        if cap:
            return int(cap)
    except Exception:
        pass
    return 64 * 1024 * 1024          # conservative default = v7x per-TC VMEM


def _vmem_limit_bytes():
    # Leave ~25% headroom for Mosaic internal scratch / double buffers:
    # ~48 MiB on 64-MiB v7x, ~96 MiB on 128-MiB v5e/v6e.
    return int(min(_vmem_capacity_bytes() * 3 // 4, 100 * 1024 * 1024))


def _edge_tiling(etot):
    """Etot tile (multiple of 128 -> lane-aligned s tiles) and padded Etot."""
    te_max = 1024 if _vmem_capacity_bytes() >= 96 * 1024 * 1024 else 512
    if etot <= te_max:
        te = _round_up(etot, 128)
        return te, te
    return te_max, _round_up(etot, te_max)


# ----------------------------------------------------------------------------
# Fused Pallas kernel: all GIN layers + BN + ReLU + mean pool
#   grid = (num_layer, Etot // TE);  both axes sequential ("arbitrary").
# ----------------------------------------------------------------------------
def fused_gnn_kernel(h0_ref, gcat_ref, s_ref, w1_ref, w2_ref, ee_ref, vec_ref,
                     pool_ref, invcnt_ref, node_out_ref, graph_out_ref,
                     h_scr, rhs_scr, aggr_scr, *, num_layer, n_pad, n_valid):
    layer = pl.program_id(0)
    et = pl.program_id(1)
    n_et = pl.num_programs(1)

    # ---- per-layer init: (re)build rhs = [h ; edge tables], zero the accum.
    @pl.when(et == 0)
    def _init_layer():
        @pl.when(layer == 0)
        def _():
            h_scr[...] = h0_ref[...]                       # bf16 node embeddings
        rhs_scr[:n_pad, :] = h_scr[...]
        rhs_scr[n_pad:, :] = ee_ref[...]                   # packed edge-emb tables
        aggr_scr[...] = jnp.zeros_like(aggr_scr)

    # ---- streamed GIN 'add' aggregation over one Etot tile:
    #   msg  = [onehot(src) | edge_onehot] @ [h ; ee]   (fused gather + lookup)
    #   aggr += onehot(tgt)^T @ msg                      (scatter-add per target)
    msg = jnp.dot(gcat_ref[...], rhs_scr[...],
                  preferred_element_type=jnp.float32)                    # [TE, LANE]
    aggr_scr[...] += jnp.dot(s_ref[...], msg.astype(jnp.bfloat16),
                             preferred_element_type=jnp.float32)         # [N, LANE]

    # ---- layer epilogue at the last Etot tile: MLP + BN (+ ReLU) (+ pool).
    @pl.when(et == n_et - 1)
    def _finish_layer():
        vec = vec_ref[...]                                 # [4, LANE] f32
        b1, b2 = vec[0:1, :], vec[1:2, :]
        gamma, beta = vec[2:3, :], vec[3:4, :]

        aggr = aggr_scr[...]
        hid = jnp.dot(aggr.astype(jnp.bfloat16), w1_ref[...],
                      preferred_element_type=jnp.float32) + b1
        hid = jnp.maximum(hid, 0.0)
        out = jnp.dot(hid.astype(jnp.bfloat16), w2_ref[...],
                      preferred_element_type=jnp.float32) + b2

        # BatchNorm1d, training-mode batch stats over the *real* nodes only,
        # centered two-pass variance (stable vs. E[x^2] - E[x]^2).
        inv_n = 1.0 / float(n_valid)
        if n_valid == n_pad:
            mean = jnp.sum(out, axis=0, keepdims=True) * inv_n
            cent = out - mean
            var = jnp.sum(cent * cent, axis=0, keepdims=True) * inv_n
        else:
            row_ids = jax.lax.broadcasted_iota(jnp.int32, (n_pad, 1), 0)
            mask = (row_ids < n_valid).astype(jnp.float32)
            mean = jnp.sum(out * mask, axis=0, keepdims=True) * inv_n
            cent = out - mean
            var = jnp.sum(cent * cent * mask, axis=0, keepdims=True) * inv_n
        out = cent * jax.lax.rsqrt(var + 1e-5) * gamma + beta

        # dropout(p=0) == identity; ReLU on every layer but the last.
        is_last = layer == num_layer - 1
        out = jnp.where(is_last, out, jnp.maximum(out, 0.0))
        h_scr[...] = out.astype(jnp.bfloat16)              # bf16 carry between layers

        @pl.when(is_last)
        def _epilogue():
            node_out_ref[...] = out                        # f32, pre-bf16-rounding
            pooled = jnp.dot(pool_ref[...], out.astype(jnp.bfloat16),
                             preferred_element_type=jnp.float32)          # [G, LANE]
            graph_out_ref[...] = pooled * invcnt_ref[...]  # mean = sum / count (f32)


def run_fused_gnn(h0, gcat, s, w1, w2, ee, vec, pool, invcnt,
                  num_layer, n_valid, te):
    n_pad = h0.shape[0]
    etot_pad, ncat = gcat.shape
    g = pool.shape[0]
    nt = etot_pad // te
    L = num_layer

    flops = int(2 * L * etot_pad * (ncat + n_pad) * LANE        # msg + scatter-add
                + 4 * L * n_pad * LANE * LANE                   # MLP
                + 2 * g * n_pad * LANE)                         # mean pool
    nbytes = lambda a: int(a.size) * a.dtype.itemsize
    bytes_accessed = int(L * (nbytes(gcat) + nbytes(s))         # streamed per layer
                         + sum(nbytes(a) for a in (h0, w1, w2, ee, vec, pool, invcnt))
                         + (n_pad + g) * LANE * 4)              # outputs

    kernel = functools.partial(fused_gnn_kernel, num_layer=num_layer,
                               n_pad=n_pad, n_valid=n_valid)

    return pl.pallas_call(
        kernel,
        out_shape=(jax.ShapeDtypeStruct((n_pad, LANE), jnp.float32),
                   jax.ShapeDtypeStruct((g, LANE), jnp.float32)),
        grid_spec=pltpu.PrefetchScalarGridSpec(
            num_scalar_prefetch=0,
            grid=(L, nt),
            in_specs=[
                pl.BlockSpec((n_pad, LANE), lambda l, e: (0, 0)),            # h0
                pl.BlockSpec((te, ncat), lambda l, e: (e, 0)),               # gcat tile
                pl.BlockSpec((n_pad, te), lambda l, e: (0, e)),              # scatter tile
                pl.BlockSpec((None, LANE, LANE), lambda l, e: (l, 0, 0)),    # W1[l]
                pl.BlockSpec((None, LANE, LANE), lambda l, e: (l, 0, 0)),    # W2[l]
                pl.BlockSpec((None, EDGE_TAB, LANE), lambda l, e: (l, 0, 0)),# EE[l]
                pl.BlockSpec((None, 4, LANE), lambda l, e: (l, 0, 0)),       # VEC[l]
                pl.BlockSpec((g, n_pad), lambda l, e: (0, 0)),               # pool one-hot
                pl.BlockSpec((g, 1), lambda l, e: (0, 0)),                   # 1/count
            ],
            out_specs=(pl.BlockSpec((n_pad, LANE), lambda l, e: (0, 0)),
                       pl.BlockSpec((g, LANE), lambda l, e: (0, 0))),
            scratch_shapes=[
                pltpu.VMEM((n_pad, LANE), jnp.bfloat16),            # h carry
                pltpu.VMEM((n_pad + EDGE_TAB, LANE), jnp.bfloat16), # rhs = [h ; ee]
                pltpu.VMEM((n_pad, LANE), jnp.float32),             # aggr accumulator
            ]),
        compiler_params=pltpu.CompilerParams(
            dimension_semantics=("arbitrary", "arbitrary"),
            vmem_limit_bytes=_vmem_limit_bytes()),
        cost_estimate=pl.CostEstimate(flops=flops,
                                      transcendentals=int(L * LANE),
                                      bytes_accessed=bytes_accessed),
    )(h0, gcat, s, w1, w2, ee, vec, pool, invcnt)


# ----------------------------------------------------------------------------
# Parameters (stored directly in the packed / lane-padded device layout)
# ----------------------------------------------------------------------------
def xavier_uniform(key, shape):
    bound = jnp.sqrt(6.0 / (shape[0] + shape[1]))
    return jax.random.uniform(key, shape, minval=-bound, maxval=bound,
                              dtype=jnp.float32)


def init_params(key, num_layer, emb_dim):
    assert emb_dim <= LANE // 2, "packed layout assumes D and 2*D both fit in 128 lanes"
    keys = jax.random.split(key, 2 + num_layer)

    def pad_cols(a):
        return jnp.pad(a, ((0, 0), (0, LANE - a.shape[1])))

    x_emb1 = pad_cols(xavier_uniform(keys[0], (NUM_ATOM_TYPE, emb_dim)))
    x_emb2 = pad_cols(xavier_uniform(keys[1], (NUM_CHIRALITY_TAG, emb_dim)))

    w1_l, w2_l, ee_l, vec_l = [], [], [], []
    for l in range(num_layer):
        k = jax.random.split(keys[2 + l], 6)
        e1 = xavier_uniform(k[0], (NUM_BOND_TYPE, emb_dim))
        e2 = xavier_uniform(k[1], (NUM_BOND_DIRECTION, emb_dim))
        w1 = xavier_uniform(k[2], (emb_dim, 2 * emb_dim))
        b1 = 0.01 * jax.random.normal(k[3], (2 * emb_dim,), dtype=jnp.float32)
        w2 = xavier_uniform(k[4], (2 * emb_dim, emb_dim))
        b2 = 0.01 * jax.random.normal(k[5], (emb_dim,), dtype=jnp.float32)
        gamma = jnp.ones((emb_dim,), jnp.float32)
        beta = jnp.zeros((emb_dim,), jnp.float32)

        W1 = jnp.zeros((LANE, LANE), jnp.float32).at[:emb_dim, :2 * emb_dim].set(w1)
        W2 = jnp.zeros((LANE, LANE), jnp.float32).at[:2 * emb_dim, :emb_dim].set(w2)
        EE = jnp.zeros((EDGE_TAB, LANE), jnp.float32)
        EE = EE.at[:NUM_BOND_TYPE, :emb_dim].set(e1)
        EE = EE.at[NUM_BOND_TYPE:NUM_BOND_TYPE + NUM_BOND_DIRECTION, :emb_dim].set(e2)
        VEC = jnp.zeros((4, LANE), jnp.float32)
        VEC = VEC.at[0, :2 * emb_dim].set(b1)
        VEC = VEC.at[1, :emb_dim].set(b2)
        VEC = VEC.at[2, :emb_dim].set(gamma)   # padded lanes keep gamma=0 -> stay zero
        VEC = VEC.at[3, :emb_dim].set(beta)
        w1_l.append(W1); w2_l.append(W2); ee_l.append(EE); vec_l.append(VEC)

    return {
        "x_emb1": x_emb1,                                   # [121, 128] f32
        "x_emb2": x_emb2,                                   # [11, 128]  f32
        "W1": jnp.stack(w1_l).astype(jnp.bfloat16),         # [L, 128, 128]
        "W2": jnp.stack(w2_l).astype(jnp.bfloat16),         # [L, 128, 128]
        "EE": jnp.stack(ee_l).astype(jnp.bfloat16),         # [L, 16, 128]
        "VEC": jnp.stack(vec_l),                            # [L, 4, 128] f32
    }


# ----------------------------------------------------------------------------
# Forward (XLA glue: integer gathers + one-hot structure construction)
# ----------------------------------------------------------------------------
def discrete_gnn2_forward(params, x, edge_index, edge_attr, batch,
                          num_layer, num_graphs, emb_dim):
    """Matches DiscreteGNN2.forward with JK='last', graph_pooling='mean',
    drop_ratio=0, gnn_type='gin', training-mode BatchNorm."""
    N = x.shape[0]
    E = edge_index.shape[1]
    etot = E + N                                  # edges + self loops

    n_pad = _round_up(N, 16)                      # bf16 sublane-pack alignment
    te, etot_pad = _edge_tiling(etot)

    # node embedding lookups (integer gather -> XLA glue), lane-padded, bf16 carry
    h0 = (jnp.take(params["x_emb1"], x[:, 0], axis=0)
          + jnp.take(params["x_emb2"], x[:, 1], axis=0))                 # [N, 128] f32
    h0 = jnp.pad(h0, ((0, n_pad - N), (0, 0))).astype(jnp.bfloat16)

    # add self loops (src == tgt, attr = [4, 0]) — same as the PyTorch GINConv
    self_idx = jnp.arange(N, dtype=edge_index.dtype)
    src_all = jnp.concatenate([edge_index[0], self_idx])                 # [etot]
    tgt_all = jnp.concatenate([edge_index[1], self_idx])                 # [etot]
    self_loop_attr = jnp.stack([jnp.full((N,), 4, edge_attr.dtype),
                                jnp.zeros((N,), edge_attr.dtype)], axis=1)
    ea_all = jnp.concatenate([edge_attr, self_loop_attr], axis=0)        # [etot, 2]

    node_ids = jnp.arange(n_pad)

    # fused gather operand: gcat = [onehot(src) | bond-type/direction one-hots]
    gsrc = (src_all[:, None] == node_ids[None, :]).astype(jnp.bfloat16)  # [etot, n_pad]
    ohe_t = ea_all[:, 0:1] == jnp.arange(NUM_BOND_TYPE)[None, :]
    ohe_d = ea_all[:, 1:2] == jnp.arange(NUM_BOND_DIRECTION)[None, :]
    ohe = jnp.concatenate(
        [ohe_t, ohe_d,
         jnp.zeros((etot, EDGE_TAB - NUM_BOND_TYPE - NUM_BOND_DIRECTION), bool)],
        axis=1).astype(jnp.bfloat16)                                     # [etot, 16]
    gcat = jnp.concatenate([gsrc, ohe], axis=1)                          # [etot, n_pad+16]
    gcat = jnp.pad(gcat, ((0, etot_pad - etot), (0, 0)))

    # scatter-add operand: one-hot(tgt)^T  (padded rows/cols are zero)
    s = (node_ids[:, None] == tgt_all[None, :]).astype(jnp.bfloat16)     # [n_pad, etot]
    s = jnp.pad(s, ((0, 0), (0, etot_pad - etot)))

    # mean pool: exact bf16 one-hot matmul + f32 1/count scaling in the kernel
    pool = jnp.arange(num_graphs)[:, None] == batch[None, :]             # [G, N] bool
    counts = jnp.maximum(jnp.sum(pool, axis=1, keepdims=True).astype(jnp.float32), 1.0)
    invcnt = 1.0 / counts                                                # [G, 1] f32
    pool = jnp.pad(pool, ((0, 0), (0, n_pad - N))).astype(jnp.bfloat16)  # [G, n_pad]

    node_pad, graph_pad = run_fused_gnn(
        h0, gcat, s, params["W1"], params["W2"], params["EE"], params["VEC"],
        pool, invcnt, num_layer, N, te)

    # strip lane / row padding (padded lanes and rows are never mixed into real ones)
    return graph_pad[:, :emb_dim], node_pad[:N, :emb_dim]


# ----------------------------------------------------------------------------
if __name__ == "__main__":
    key = jax.random.PRNGKey(0)
    k_param, k_x0, k_x1, k_src, k_tgt, k_e0, k_e1 = jax.random.split(key, 7)

    num_layer = 2
    emb_dim = 32
    N = 16          # nodes
    E = 24          # directed edges
    G = 2           # graphs in the batch

    params = init_params(k_param, num_layer, emb_dim)

    # node integer features: [atom_type, chirality_tag]
    x = jnp.stack(
        [jax.random.randint(k_x0, (N,), 0, NUM_ATOM_TYPE),
         jax.random.randint(k_x1, (N,), 0, NUM_CHIRALITY_TAG)], axis=1)
    edge_index = jnp.stack(
        [jax.random.randint(k_src, (E,), 0, N),
         jax.random.randint(k_tgt, (E,), 0, N)], axis=0)
    edge_attr = jnp.stack(
        [jax.random.randint(k_e0, (E,), 0, NUM_BOND_TYPE),
         jax.random.randint(k_e1, (E,), 0, NUM_BOND_DIRECTION)], axis=1)
    batch = jnp.concatenate(
        [jnp.zeros((N // 2,), jnp.int32), jnp.ones((N - N // 2,), jnp.int32)])

    fwd = jax.jit(discrete_gnn2_forward, static_argnums=(5, 6, 7))
    graph_agg, node_rep = fwd(params, x, edge_index, edge_attr, batch,
                              num_layer, G, emb_dim)
    jax.block_until_ready((graph_agg, node_rep))

    assert graph_agg.shape == (G, emb_dim)
    assert node_rep.shape == (N, emb_dim)
    assert bool(jnp.all(jnp.isfinite(graph_agg)))
    assert bool(jnp.all(jnp.isfinite(node_rep)))
    print("KERNEL_OK")
</pallas_src>

<mosaic_0001>
module attributes {stable_mosaic.version = 11 : i64} {
  func.func @fused_gnn_kernel(%arg0: i32, %arg1: i32, %arg2: memref<16x128xbf16, #tpu.memory_space<vmem>>, %arg3: memref<128x32xbf16, #tpu.memory_space<vmem>>, %arg4: memref<16x128xbf16, #tpu.memory_space<vmem>>, %arg5: memref<1x128x128xbf16, #tpu.memory_space<vmem>>, %arg6: memref<1x128x128xbf16, #tpu.memory_space<vmem>>, %arg7: memref<1x16x128xbf16, #tpu.memory_space<vmem>>, %arg8: memref<1x4x128xf32, #tpu.memory_space<vmem>>, %arg9: memref<2x16xbf16, #tpu.memory_space<vmem>>, %arg10: memref<2x1xf32, #tpu.memory_space<vmem>>, %arg11: memref<16x128xf32, #tpu.memory_space<vmem>>, %arg12: memref<2x128xf32, #tpu.memory_space<vmem>>, %arg13: memref<16x128xbf16, #tpu.memory_space<vmem>>, %arg14: memref<32x128xbf16, #tpu.memory_space<vmem>>, %arg15: memref<16x128xf32, #tpu.memory_space<vmem>>) attributes {dimension_semantics = [#tpu.dimension_semantics<arbitrary>, #tpu.dimension_semantics<arbitrary>], iteration_bounds = array<i64: 2, 1>, scalar_prefetch = 0 : i64, scratch_operands = 3 : i64, tpu.core_type = #tpu.core_type<tc>, window_params = [{pipeline_mode = #tpu.pipeline_mode<synchronous>, transform_indices = @transform_0, window_bounds = array<i64: 16, 128>}, {transform_indices = @transform_1, window_bounds = array<i64: 128, 32>}, {transform_indices = @transform_2, window_bounds = array<i64: 16, 128>}, {transform_indices = @transform_3, window_bounds = array<i64: 1, 128, 128>}, {transform_indices = @transform_4, window_bounds = array<i64: 1, 128, 128>}, {transform_indices = @transform_5, window_bounds = array<i64: 1, 16, 128>}, {transform_indices = @transform_6, window_bounds = array<i64: 1, 4, 128>}, {pipeline_mode = #tpu.pipeline_mode<synchronous>, transform_indices = @transform_7, window_bounds = array<i64: 2, 16>}, {pipeline_mode = #tpu.pipeline_mode<synchronous>, transform_indices = @transform_8, window_bounds = array<i64: 2, 1>}, {pipeline_mode = #tpu.pipeline_mode<synchronous>, transform_indices = @transform_9, window_bounds = array<i64: 16, 128>}, {pipeline_mode = #tpu.pipeline_mode<synchronous>, transform_indices = @transform_10, window_bounds = array<i64: 2, 128>}]} {
    %c0_i32 = arith.constant 0 : i32
    %0 = arith.cmpi eq, %arg1, %c0_i32 : i32
    %1 = arith.extui %0 : i1 to i32
    %c0_i32_0 = arith.constant 0 : i32
    %2 = arith.cmpi ne, %1, %c0_i32_0 : i32
    scf.if %2 {
      %c0_i32_13 = arith.constant 0 : i32
      %15 = arith.cmpi eq, %arg0, %c0_i32_13 : i32
      %16 = arith.extui %15 : i1 to i32
      %c0_i32_14 = arith.constant 0 : i32
      %17 = arith.cmpi ne, %16, %c0_i32_14 : i32
      scf.if %17 {
        %c0_26 = arith.constant 0 : index
        %c0_27 = arith.constant 0 : index
        %25 = vector.load %arg2[%c0_26, %c0_27] : memref<16x128xbf16, #tpu.memory_space<vmem>>, vector<16x128xbf16>
        %c0_28 = arith.constant 0 : index
        %c0_29 = arith.constant 0 : index
        %26 = vector.load %arg13[%c0_28, %c0_29] : memref<16x128xbf16, #tpu.memory_space<vmem>>, vector<16x128xbf16>
        tpu.vector_store %arg13[%c0_28, %c0_29], %25 {strides = array<i32>} : memref<16x128xbf16, #tpu.memory_space<vmem>>, vector<16x128xbf16>,
      } else {
      }
      %c0_15 = arith.constant 0 : index
      %c0_16 = arith.constant 0 : index
      %18 = vector.load %arg13[%c0_15, %c0_16] : memref<16x128xbf16, #tpu.memory_space<vmem>>, vector<16x128xbf16>
      %c0_17 = arith.constant 0 : index
      %c0_18 = arith.constant 0 : index
      %19 = vector.load %arg14[%c0_17, %c0_18] : memref<32x128xbf16, #tpu.memory_space<vmem>>, vector<16x128xbf16>
      tpu.vector_store %arg14[%c0_17, %c0_18], %18 {strides = array<i32>} : memref<32x128xbf16, #tpu.memory_space<vmem>>, vector<16x128xbf16>,
      %c0_19 = arith.constant 0 : index
      %c0_20 = arith.constant 0 : index
      %c0_21 = arith.constant 0 : index
      %20 = vector.load %arg7[%c0_19, %c0_20, %c0_21] : memref<1x16x128xbf16, #tpu.memory_space<vmem>>, vector<1x16x128xbf16>
      %21 = vector.shape_cast %20 : vector<1x16x128xbf16> to vector<16x128xbf16>
      %c16 = arith.constant 16 : index
      %c0_22 = arith.constant 0 : index
      %22 = vector.load %arg14[%c16, %c0_22] : memref<32x128xbf16, #tpu.memory_space<vmem>>, vector<16x128xbf16>
      tpu.vector_store %arg14[%c16, %c0_22], %21 {strides = array<i32>} : memref<32x128xbf16, #tpu.memory_space<vmem>>, vector<16x128xbf16>,
      %cst_23 = arith.constant 0.000000e+00 : f32
      %23 = vector.broadcast %cst_23 : f32 to vector<16x128xf32>
      %c0_24 = arith.constant 0 : index
      %c0_25 = arith.constant 0 : index
      %24 = vector.load %arg15[%c0_24, %c0_25] : memref<16x128xf32, #tpu.memory_space<vmem>>, vector<16x128xf32>
      tpu.vector_store %arg15[%c0_24, %c0_25], %23 {strides = array<i32>} : memref<16x128xf32, #tpu.memory_space<vmem>>, vector<16x128xf32>,
    } else {
    }
    %c0 = arith.constant 0 : index
    %c0_1 = arith.constant 0 : index
    %3 = vector.load %arg3[%c0, %c0_1] : memref<128x32xbf16, #tpu.memory_space<vmem>>, vector<128x32xbf16>
    %c0_2 = arith.constant 0 : index
    %c0_3 = arith.constant 0 : index
    %4 = vector.load %arg14[%c0_2, %c0_3] : memref<32x128xbf16, #tpu.memory_space<vmem>>, vector<32x128xbf16>
    %cst = arith.constant dense<0.000000e+00> : vector<128x128xf32>
    %5 = tpu.matmul %3, %4, %cst {dimension_numbers = #tpu.dot_dimension_numbers<[1], [0], [0], [1], [0, 0, 1, 1], [], []>} : vector<128x32xbf16>, vector<32x128xbf16>, vector<128x128xf32> -> vector<128x128xf32>
    %c0_4 = arith.constant 0 : index
    %c0_5 = arith.constant 0 : index
    %6 = vector.load %arg15[%c0_4, %c0_5] : memref<16x128xf32, #tpu.memory_space<vmem>>, vector<16x128xf32>
    %c0_6 = arith.constant 0 : index
    %c0_7 = arith.constant 0 : index
    %7 = vector.load %arg4[%c0_6, %c0_7] : memref<16x128xbf16, #tpu.memory_space<vmem>>, vector<16x128xbf16>
    %8 = arith.truncf %5 : vector<128x128xf32> to vector<128x128xbf16>
    %cst_8 = arith.constant dense<0.000000e+00> : vector<16x128xf32>
    %9 = tpu.matmul %7, %8, %cst_8 {dimension_numbers = #tpu.dot_dimension_numbers<[1], [0], [0], [1], [0, 0, 1, 1], [], []>} : vector<16x128xbf16>, vector<128x128xbf16>, vector<16x128xf32> -> vector<16x128xf32>
    %10 = arith.addf %6, %9 : vector<16x128xf32>
    %c0_9 = arith.constant 0 : index
    %c0_10 = arith.constant 0 : index
    %11 = vector.load %arg15[%c0_9, %c0_10] : memref<16x128xf32, #tpu.memory_space<vmem>>, vector<16x128xf32>
    tpu.vector_store %arg15[%c0_9, %c0_10], %10 {strides = array<i32>} : memref<16x128xf32, #tpu.memory_space<vmem>>, vector<16x128xf32>,
    %c0_i32_11 = arith.constant 0 : i32
    %12 = arith.cmpi eq, %arg1, %c0_i32_11 : i32
    %13 = arith.extui %12 : i1 to i32
    %c0_i32_12 = arith.constant 0 : i32
    %14 = arith.cmpi ne, %13, %c0_i32_12 : i32
    scf.if %14 {
      %c0_13 = arith.constant 0 : index
      %c0_14 = arith.constant 0 : index
      %c0_15 = arith.constant 0 : index
      %15 = vector.load %arg8[%c0_13, %c0_14, %c0_15] : memref<1x4x128xf32, #tpu.memory_space<vmem>>, vector<1x4x128xf32>
      %16 = vector.shape_cast %15 : vector<1x4x128xf32> to vector<4x128xf32>
      %17 = vector.extract_strided_slice %16 {offsets = [0, 0], sizes = [1, 128], strides = [1, 1]} : vector<4x128xf32> to vector<1x128xf32>
      %18 = vector.extract_strided_slice %16 {offsets = [1, 0], sizes = [1, 128], strides = [1, 1]} : vector<4x128xf32> to vector<1x128xf32>
      %19 = vector.extract_strided_slice %16 {offsets = [2, 0], sizes = [1, 128], strides = [1, 1]} : vector<4x128xf32> to vector<1x128xf32>
      %20 = vector.extract_strided_slice %16 {offsets = [3, 0], sizes = [1, 128], strides = [1, 1]} : vector<4x128xf32> to vector<1x128xf32>
      %c0_16 = arith.constant 0 : index
      %c0_17 = arith.constant 0 : index
      %21 = vector.load %arg15[%c0_16, %c0_17] : memref<16x128xf32, #tpu.memory_space<vmem>>, vector<16x128xf32>
      %22 = arith.truncf %21 : vector<16x128xf32> to vector<16x128xbf16>
      %c0_18 = arith.constant 0 : index
      %c0_19 = arith.constant 0 : index
      %c0_20 = arith.constant 0 : index
      %23 = vector.load %arg5[%c0_18, %c0_19, %c0_20] : memref<1x128x128xbf16, #tpu.memory_space<vmem>>, vector<1x128x128xbf16>
      %24 = vector.shape_cast %23 : vector<1x128x128xbf16> to vector<128x128xbf16>
      %cst_21 = arith.constant dense<0.000000e+00> : vector<16x128xf32>
      %25 = tpu.matmul %22, %24, %cst_21 {dimension_numbers = #tpu.dot_dimension_numbers<[1], [0], [0], [1], [0, 0, 1, 1], [], []>} : vector<16x128xbf16>, vector<128x128xbf16>, vector<16x128xf32> -> vector<16x128xf32>
      %26 = vector.broadcast %17 : vector<1x128xf32> to vector<16x128xf32>
      %27 = arith.addf %25, %26 : vector<16x128xf32>
      %cst_22 = arith.constant 0.000000e+00 : f32
      %28 = vector.broadcast %cst_22 : f32 to vector<16x128xf32>
      %29 = arith.maximumf %27, %28 : vector<16x128xf32>
      %30 = arith.truncf %29 : vector<16x128xf32> to vector<16x128xbf16>
      %c0_23 = arith.constant 0 : index
      %c0_24 = arith.constant 0 : index
      %c0_25 = arith.constant 0 : index
      %31 = vector.load %arg6[%c0_23, %c0_24, %c0_25] : memref<1x128x128xbf16, #tpu.memory_space<vmem>>, vector<1x128x128xbf16>
      %32 = vector.shape_cast %31 : vector<1x128x128xbf16> to vector<128x128xbf16>
      %cst_26 = arith.constant dense<0.000000e+00> : vector<16x128xf32>
      %33 = tpu.matmul %30, %32, %cst_26 {dimension_numbers = #tpu.dot_dimension_numbers<[1], [0], [0], [1], [0, 0, 1, 1], [], []>} : vector<16x128xbf16>, vector<128x128xbf16>, vector<16x128xf32> -> vector<16x128xf32>
      %34 = vector.broadcast %18 : vector<1x128xf32> to vector<16x128xf32>
      %35 = arith.addf %33, %34 : vector<16x128xf32>
      %cst_27 = arith.constant dense<0.000000e+00> : vector<128xf32>
      %36 = vector.multi_reduction <add>, %35, %cst_27 [0] : vector<16x128xf32> to vector<128xf32>
      %37 = vector.shape_cast %36 : vector<128xf32> to vector<1x128xf32>
      %cst_28 = arith.constant 6.250000e-02 : f32
      %38 = vector.broadcast %cst_28 : f32 to vector<1x128xf32>
      %39 = arith.mulf %37, %38 : vector<1x128xf32>
      %40 = vector.broadcast %39 : vector<1x128xf32> to vector<16x128xf32>
      %41 = arith.subf %35, %40 : vector<16x128xf32>
      %42 = arith.mulf %41, %41 : vector<16x128xf32>
      %cst_29 = arith.constant dense<0.000000e+00> : vector<128xf32>
      %43 = vector.multi_reduction <add>, %42, %cst_29 [0] : vector<16x128xf32> to vector<128xf32>
      %44 = vector.shape_cast %43 : vector<128xf32> to vector<1x128xf32>
      %cst_30 = arith.constant 6.250000e-02 : f32
      %45 = vector.broadcast %cst_30 : f32 to vector<1x128xf32>
      %46 = arith.mulf %44, %45 : vector<1x128xf32>
      %cst_31 = arith.constant 9.99999974E-6 : f32
      %47 = vector.broadcast %cst_31 : f32 to vector<1x128xf32>
      %48 = arith.addf %46, %47 : vector<1x128xf32>
      %49 = math.rsqrt %48 : vector<1x128xf32>
      %50 = vector.broadcast %49 : vector<1x128xf32> to vector<16x128xf32>
      %51 = arith.mulf %41, %50 : vector<16x128xf32>
      %52 = vector.broadcast %19 : vector<1x128xf32> to vector<16x128xf32>
      %53 = arith.mulf %51, %52 : vector<16x128xf32>
      %54 = vector.broadcast %20 : vector<1x128xf32> to vector<16x128xf32>
      %55 = arith.addf %53, %54 : vector<16x128xf32>
      %c1_i32 = arith.constant 1 : i32
      %56 = arith.cmpi eq, %arg0, %c1_i32 : i32
      %cst_32 = arith.constant 0.000000e+00 : f32
      %57 = vector.broadcast %cst_32 : f32 to vector<16x128xf32>
      %58 = arith.maximumf %55, %57 : vector<16x128xf32>
      %59 = arith.select %56, %55, %58 : vector<16x128xf32>
      %60 = arith.truncf %59 : vector<16x128xf32> to vector<16x128xbf16>
      %c0_33 = arith.constant 0 : index
      %c0_34 = arith.constant 0 : index
      %61 = vector.load %arg13[%c0_33, %c0_34] : memref<16x128xbf16, #tpu.memory_space<vmem>>, vector<16x128xbf16>
      tpu.vector_store %arg13[%c0_33, %c0_34], %60 {strides = array<i32>} : memref<16x128xbf16, #tpu.memory_space<vmem>>, vector<16x128xbf16>,
      %62 = arith.extui %56 : i1 to i32
      %c0_i32_35 = arith.constant 0 : i32
      %63 = arith.cmpi ne, %62, %c0_i32_35 : i32
      scf.if %63 {
        %c0_36 = arith.constant 0 : index
        %c0_37 = arith.constant 0 : index
        %64 = vector.load %arg11[%c0_36, %c0_37] : memref<16x128xf32, #tpu.memory_space<vmem>>, vector<16x128xf32>
        tpu.vector_store %arg11[%c0_36, %c0_37], %59 {strides = array<i32>} : memref<16x128xf32, #tpu.memory_space<vmem>>, vector<16x128xf32>,
        %c0_38 = arith.constant 0 : index
        %c0_39 = arith.constant 0 : index
        %65 = vector.load %arg9[%c0_38, %c0_39] : memref<2x16xbf16, #tpu.memory_space<vmem>>, vector<2x16xbf16>
        %66 = arith.truncf %59 : vector<16x128xf32> to vector<16x128xbf16>
        %cst_40 = arith.constant dense<0.000000e+00> : vector<2x128xf32>
        %67 = tpu.matmul %65, %66, %cst_40 {dimension_numbers = #tpu.dot_dimension_numbers<[1], [0], [0], [1], [0, 0, 1, 1], [], []>} : vector<2x16xbf16>, vector<16x128xbf16>, vector<2x128xf32> -> vector<2x128xf32>
        %c0_41 = arith.constant 0 : index
        %c0_42 = arith.constant 0 : index
        %68 = vector.load %arg10[%c0_41, %c0_42] : memref<2x1xf32, #tpu.memory_space<vmem>>, vector<2x1xf32>
        %69 = vector.broadcast %68 : vector<2x1xf32> to vector<2x128xf32>
        %70 = arith.mulf %67, %69 : vector<2x128xf32>
        %c0_43 = arith.constant 0 : index
        %c0_44 = arith.constant 0 : index
        %71 = vector.load %arg12[%c0_43, %c0_44] : memref<2x128xf32, #tpu.memory_space<vmem>>, vector<2x128xf32>
        tpu.vector_store %arg12[%c0_43, %c0_44], %70 {strides = array<i32>} : memref<2x128xf32, #tpu.memory_space<vmem>>, vector<2x128xf32>,
      } else {
      }
    } else {
    }
    return
  }
  func.func @transform_0(%arg0: i32, %arg1: i32) -> (i32, i32) {
    %c0_i32 = arith.constant 0 : i32
    %c0_i32_0 = arith.constant 0 : i32
    %c0_i32_1 = arith.constant 0 : i32
    return %c0_i32, %c0_i32_0 : i32, i32
  }
  func.func @transform_1(%arg0: i32, %arg1: i32) -> (i32, i32) {
    %c0_i32 = arith.constant 0 : i32
    %c0_i32_0 = arith.constant 0 : i32
    return %arg1, %c0_i32 : i32, i32
  }
  func.func @transform_2(%arg0: i32, %arg1: i32) -> (i32, i32) {
    %c0_i32 = arith.constant 0 : i32
    %c0_i32_0 = arith.constant 0 : i32
    return %c0_i32, %arg1 : i32, i32
  }
  func.func @transform_3(%arg0: i32, %arg1: i32) -> (i32, i32, i32) {
    %c0_i32 = arith.constant 0 : i32
    %c0_i32_0 = arith.constant 0 : i32
    %c0_i32_1 = arith.constant 0 : i32
    return %arg0, %c0_i32, %c0_i32_0 : i32, i32, i32
  }
  func.func @transform_4(%arg0: i32, %arg1: i32) -> (i32, i32, i32) {
    %c0_i32 = arith.constant 0 : i32
    %c0_i32_0 = arith.constant 0 : i32
    %c0_i32_1 = arith.constant 0 : i32
    return %arg0, %c0_i32, %c0_i32_0 : i32, i32, i32
  }
  func.func @transform_5(%arg0: i32, %arg1: i32) -> (i32, i32, i32) {
    %c0_i32 = arith.constant 0 : i32
    %c0_i32_0 = arith.constant 0 : i32
    %c0_i32_1 = arith.constant 0 : i32
    return %arg0, %c0_i32, %c0_i32_0 : i32, i32, i32
  }
  func.func @transform_6(%arg0: i32, %arg1: i32) -> (i32, i32, i32) {
    %c0_i32 = arith.constant 0 : i32
    %c0_i32_0 = arith.constant 0 : i32
    %c0_i32_1 = arith.constant 0 : i32
    return %arg0, %c0_i32, %c0_i32_0 : i32, i32, i32
  }
  func.func @transform_7(%arg0: i32, %arg1: i32) -> (i32, i32) {
    %c0_i32 = arith.constant 0 : i32
    %c0_i32_0 = arith.constant 0 : i32
    %c0_i32_1 = arith.constant 0 : i32
    return %c0_i32, %c0_i32_0 : i32, i32
  }
  func.func @transform_8(%arg0: i32, %arg1: i32) -> (i32, i32) {
    %c0_i32 = arith.constant 0 : i32
    %c0_i32_0 = arith.constant 0 : i32
    %c0_i32_1 = arith.constant 0 : i32
    return %c0_i32, %c0_i32_0 : i32, i32
  }
  func.func @transform_9(%arg0: i32, %arg1: i32) -> (i32, i32) {
    %c0_i32 = arith.constant 0 : i32
    %c0_i32_0 = arith.constant 0 : i32
    %c0_i32_1 = arith.constant 0 : i32
    return %c0_i32, %c0_i32_0 : i32, i32
  }
  func.func @transform_10(%arg0: i32, %arg1: i32) -> (i32, i32) {
    %c0_i32 = arith.constant 0 : i32
    %c0_i32_0 = arith.constant 0 : i32
    %c0_i32_1 = arith.constant 0 : i32
    return %c0_i32, %c0_i32_0 : i32, i32
  }
}

</mosaic_0001>

<llo_original>
// kernel: discrete_gnn2_forward.1
$region0: #{discrete_gnn2_forward.1}
  #allocation0 [shape = 'u32[]', space=smem, size = 0x4, offset = 0x4, fixed_abs, tag = 'smem constant byte address 0x4 - core index']
  #allocation1 [shape = 'u32[144,128]{1,0:T(1,128)}', space=vmem, size = 0x12000, scoped, tag = 'internal scratch']
  #allocation2 [shape = 'bf16[16,128]{1,0:T(16,128)(2,1)}', space=vmem, size = 0x1000, scoped, tag = 'scratch operand']
  #allocation3 [shape = 'bf16[32,128]{1,0:T(16,128)(2,1)}', space=vmem, size = 0x2000, scoped, tag = 'scratch operand']
  #allocation4 [shape = 'f32[16,128]{1,0:T(8,128)}', space=vmem, size = 0x2000, scoped, tag = 'scratch operand']
  %s0 = inlined_call_operand.vmem [shape: bf16[16,128], index: 0, kind: input, shape index: {}]
  %s1 = inlined_call_operand.vmem [shape: bf16[128,32], index: 1, kind: input, shape index: {}]
  %s2 = inlined_call_operand.vmem [shape: bf16[16,128], index: 2, kind: input, shape index: {}]
  %s3 = inlined_call_operand.vmem [shape: bf16[2,128,128], index: 3, kind: input, shape index: {}]
  %s4 = inlined_call_operand.vmem [shape: bf16[2,128,128], index: 4, kind: input, shape index: {}]
  %s5 = inlined_call_operand.vmem [shape: bf16[2,16,128], index: 5, kind: input, shape index: {}]
  %s6 = inlined_call_operand.vmem [shape: f32[2,4,128], index: 6, kind: input, shape index: {}]
  %s7 = inlined_call_operand.vmem [shape: bf16[2,16], index: 7, kind: input, shape index: {}]
  %s8 = inlined_call_operand.vmem [shape: f32[2,1], index: 8, kind: input, shape index: {}]
  %s9 = inlined_call_operand.hbm [shape: f32[16,128], index: 9, kind: output, shape index: {0}]
  %s10 = inlined_call_operand.hbm [shape: f32[2,128], index: 10, kind: output, shape index: {1}]
  %11 = xla_tuple %s9, %s10
  %s12 = sld [smem:[#allocation0]]
  $region93: #{discrete_gnn2_forward.1} parent=0
    _
  %s14 = ssub.s32 1, %s12
  %s15 = scalar_select 0, %s14, %s12
  $region1: #{discrete_gnn2_forward.1} parent=0
    #allocation5 [shape = 'u8[8192]{0}', space=vmem, size = 0x2000, scoped, tag = 'output window, operand 0, single buffered']
    #allocation6 [shape = 's32[2]{0}', space=sflag, size = 0x8, scoped, tag = 'scoped memory for discrete_gnn2_forward.1']
    #allocation7 [shape = 'u8[1024]{0}', space=vmem, size = 0x400, scoped, tag = 'output window, operand 1, single buffered']
    #allocation8 [shape = 's32[1]{0}', space=sflag, size = 0x4, scoped, tag = 'scoped memory for discrete_gnn2_forward.1']
    %16 = vsyncpa [#allocation6], 0
    %17 = vsyncpa [#allocation8], 0
    loop: start=0, step=1, limit=4
    $region2: #{discrete_gnn2_forward.1} parent=1 // loop_pre_header
      _
    $region3: #{discrete_gnn2_forward.1} parent=1 // loop_header
      %s19 = sphi 0, %s23
      %p20 = scmp.ge.s32.totalorder %s19, 4
      %s26 = sphi 0, %s38
      %s27 = sphi 0, %s34
      %s28 = sphi 0, %s26
      %s29 = sphi 0, %s27
      %s30 = sphi 0, %s28
      %s31 = sphi 0, %s29
      %s39 = sphi 0, %s39
      %s41 = sphi 0, %s39
      %s42 = sphi 0, %s41
      %s56 = sphi 0, %s42
      %s62 = sphi 0, %s64
      %s65 = sphi 0, %s62
      %s66 = sphi 0, %s65
      %s82 = sphi 0, %s66
      %s88 = sphi 0, %s90
      %s91 = sphi 0, %s88
      %s92 = sphi 0, %s91
      %s108 = sphi 0, %s92
      %s114 = sphi 0, %s116
      %s117 = sphi 0, %s114
      %s118 = sphi 0, %s117
      %s134 = sphi 0, %s118
      %s140 = sphi 0, %s142
      %s143 = sphi 0, %s140
      %s144 = sphi 0, %s143
      %s160 = sphi 0, %s144
      %s166 = sphi 0, %s168
      %s169 = sphi 0, %s166
      %s170 = sphi 0, %s169
      %s186 = sphi 0, %s170
      %s192 = sphi 0, %s194
      %s195 = sphi 0, %s192
      %s196 = sphi 0, %s195
      %s212 = sphi 0, %s196
      %s216 = sphi 0, %s216
      %s218 = sphi 0, %s216
      %s219 = sphi 0, %s218
      %s233 = sphi 0, %s219
      %s237 = sphi 0, %s237
      %s239 = sphi 0, %s237
      %s240 = sphi 0, %s239
      %s254 = sphi 0, %s240
      %s258 = sphi 0, %s258
      %s260 = sphi 0, %s258
      %s261 = sphi 0, %s260
      %s275 = sphi 0, %s261
      %s279 = sphi 0, %s279
      %s281 = sphi 0, %s279
      %s282 = sphi 0, %s281
      %s296 = sphi 0, %s282
    $region4: #{discrete_gnn2_forward.1} parent=1 // loop_header_branch
      %22 = sbr.rel (%p20) target = $region8
    $region5: #{discrete_gnn2_forward.1} parent=1 // loop_body
      %s24 = ssub.s32 %s19, 1
      %s25 = ssub.s32 %s19, 2
      %s32 = sadd.s32 1, %s27
      %p33 = scmp.ge.s32.totalorder %s32, 1
      %s34 = scalar_select %p33, 0, %s32
      %s35 = sadd.s32 1, %s26
      %s36 = scalar_select %p33, %s35, %s26
      %p37 = scmp.ge.s32.totalorder %s36, 2
      %s38 = scalar_select %p37, 0, %s36
      %s40 = sadd.s32 %s39, 1
      %p43 = scmp.eq.s32.totalorder %s19, 1
      %p44 = scmp.ne.s32.totalorder %s39, %s41
      %p45 = scmp.eq.s32.totalorder %s19, 0
      %p46 = por %p44, %p45
      %p47 = scmp.ne.s32.totalorder %s39, %s41
      %p48 = scmp.eq.s32.totalorder %s24, 1
      %p49 = por %p47, %p48
      %p50 = scmp.ne.s32.totalorder %s41, %s42
      %p51 = scmp.eq.s32.totalorder %s24, 0
      %p52 = por %p50, %p51
      %p53 = scmp.ne.s32.totalorder %s41, %s42
      %p54 = scmp.eq.s32.totalorder %s25, 1
      %p55 = por %p53, %p54
      %p57 = scmp.ne.s32.totalorder %s42, %s56
      %p58 = scmp.eq.s32.totalorder %s25, 0
      %p59 = por %p57, %p58
      %s60 = ssub.s32 %s27, %s34
      %p61 = scmp.eq.s32.totalorder %s60, 0
      %s63 = sadd.s32 %s62, 1
      %s64 = scalar_select %p61, %s62, %s63
      %p67 = pneg %p61
      %p68 = scmp.eq.s32.totalorder %s19, 1
      %p69 = por %p67, %p68
      %p70 = scmp.ne.s32.totalorder %s62, %s65
      %p71 = scmp.eq.s32.totalorder %s19, 0
      %p72 = por %p70, %p71
      %p73 = scmp.ne.s32.totalorder %s62, %s65
      %p74 = scmp.eq.s32.totalorder %s24, 1
      %p75 = por %p73, %p74
      %p76 = scmp.ne.s32.totalorder %s65, %s66
      %p77 = scmp.eq.s32.totalorder %s24, 0
      %p78 = por %p76, %p77
      %p79 = scmp.ne.s32.totalorder %s65, %s66
      %p80 = scmp.eq.s32.totalorder %s25, 1
      %p81 = por %p79, %p80
      %p83 = scmp.ne.s32.totalorder %s66, %s82
      %p84 = scmp.eq.s32.totalorder %s25, 0
      %p85 = por %p83, %p84
      %s86 = ssub.s32 %s27, %s34
      %p87 = scmp.eq.s32.totalorder %s86, 0
      %s89 = sadd.s32 %s88, 1
      %s90 = scalar_select %p87, %s88, %s89
      %p93 = pneg %p87
      %p94 = scmp.eq.s32.totalorder %s19, 1
      %p95 = por %p93, %p94
      %p96 = scmp.ne.s32.totalorder %s88, %s91
      %p97 = scmp.eq.s32.totalorder %s19, 0
      %p98 = por %p96, %p97
      %p99 = scmp.ne.s32.totalorder %s88, %s91
      %p100 = scmp.eq.s32.totalorder %s24, 1
      %p101 = por %p99, %p100
      %p102 = scmp.ne.s32.totalorder %s91, %s92
      %p103 = scmp.eq.s32.totalorder %s24, 0
      %p104 = por %p102, %p103
      %p105 = scmp.ne.s32.totalorder %s91, %s92
      %p106 = scmp.eq.s32.totalorder %s25, 1
      %p107 = por %p105, %p106
      %p109 = scmp.ne.s32.totalorder %s92, %s108
      %p110 = scmp.eq.s32.totalorder %s25, 0
      %p111 = por %p109, %p110
      %s112 = ssub.s32 %s26, %s38
      %p113 = scmp.eq.s32.totalorder %s112, 0
      %s115 = sadd.s32 %s114, 1
      %s116 = scalar_select %p113, %s114, %s115
      %p119 = pneg %p113
      %p120 = scmp.eq.s32.totalorder %s19, 1
      %p121 = por %p119, %p120
      %p122 = scmp.ne.s32.totalorder %s114, %s117
      %p123 = scmp.eq.s32.totalorder %s19, 0
      %p124 = por %p122, %p123
      %p125 = scmp.ne.s32.totalorder %s114, %s117
      %p126 = scmp.eq.s32.totalorder %s24, 1
      %p127 = por %p125, %p126
      %p128 = scmp.ne.s32.totalorder %s117, %s118
      %p129 = scmp.eq.s32.totalorder %s24, 0
      %p130 = por %p128, %p129
      %p131 = scmp.ne.s32.totalorder %s117, %s118
      %p132 = scmp.eq.s32.totalorder %s25, 1
      %p133 = por %p131, %p132
      %p135 = scmp.ne.s32.totalorder %s118, %s134
      %p136 = scmp.eq.s32.totalorder %s25, 0
      %p137 = por %p135, %p136
      %s138 = ssub.s32 %s26, %s38
      %p139 = scmp.eq.s32.totalorder %s138, 0
      %s141 = sadd.s32 %s140, 1
      %s142 = scalar_select %p139, %s140, %s141
      %p145 = pneg %p139
      %p146 = scmp.eq.s32.totalorder %s19, 1
      %p147 = por %p145, %p146
      %p148 = scmp.ne.s32.totalorder %s140, %s143
      %p149 = scmp.eq.s32.totalorder %s19, 0
      %p150 = por %p148, %p149
      %p151 = scmp.ne.s32.totalorder %s140, %s143
      %p152 = scmp.eq.s32.totalorder %s24, 1
      %p153 = por %p151, %p152
      %p154 = scmp.ne.s32.totalorder %s143, %s144
      %p155 = scmp.eq.s32.totalorder %s24, 0
      %p156 = por %p154, %p155
      %p157 = scmp.ne.s32.totalorder %s143, %s144
      %p158 = scmp.eq.s32.totalorder %s25, 1
      %p159 = por %p157, %p158
      %p161 = scmp.ne.s32.totalorder %s144, %s160
      %p162 = scmp.eq.s32.totalorder %s25, 0
      %p163 = por %p161, %p162
      %s164 = ssub.s32 %s26, %s38
      %p165 = scmp.eq.s32.totalorder %s164, 0
      %s167 = sadd.s32 %s166, 1
      %s168 = scalar_select %p165, %s166, %s167
      %p171 = pneg %p165
      %p172 = scmp.eq.s32.totalorder %s19, 1
      %p173 = por %p171, %p172
      %p174 = scmp.ne.s32.totalorder %s166, %s169
      %p175 = scmp.eq.s32.totalorder %s19, 0
      %p176 = por %p174, %p175
      %p177 = scmp.ne.s32.totalorder %s166, %s169
      %p178 = scmp.eq.s32.totalorder %s24, 1
      %p179 = por %p177, %p178
      %p180 = scmp.ne.s32.totalorder %s169, %s170
      %p181 = scmp.eq.s32.totalorder %s24, 0
      %p182 = por %p180, %p181
      %p183 = scmp.ne.s32.totalorder %s169, %s170
      %p184 = scmp.eq.s32.totalorder %s25, 1
      %p185 = por %p183, %p184
      %p187 = scmp.ne.s32.totalorder %s170, %s186
      %p188 = scmp.eq.s32.totalorder %s25, 0
      %p189 = por %p187, %p188
      %s190 = ssub.s32 %s26, %s38
      %p191 = scmp.eq.s32.totalorder %s190, 0
      %s193 = sadd.s32 %s192, 1
      %s194 = scalar_select %p191, %s192, %s193
      %p197 = pneg %p191
      %p198 = scmp.eq.s32.totalorder %s19, 1
      %p199 = por %p197, %p198
      %p200 = scmp.ne.s32.totalorder %s192, %s195
      %p201 = scmp.eq.s32.totalorder %s19, 0
      %p202 = por %p200, %p201
      %p203 = scmp.ne.s32.totalorder %s192, %s195
      %p204 = scmp.eq.s32.totalorder %s24, 1
      %p205 = por %p203, %p204
      %p206 = scmp.ne.s32.totalorder %s195, %s196
      %p207 = scmp.eq.s32.totalorder %s24, 0
      %p208 = por %p206, %p207
      %p209 = scmp.ne.s32.totalorder %s195, %s196
      %p210 = scmp.eq.s32.totalorder %s25, 1
      %p211 = por %p209, %p210
      %p213 = scmp.ne.s32.totalorder %s196, %s212
      %p214 = scmp.eq.s32.totalorder %s25, 0
      %p215 = por %p213, %p214
      %s217 = sadd.s32 %s216, 1
      %p220 = scmp.eq.s32.totalorder %s19, 1
      %p221 = scmp.ne.s32.totalorder %s216, %s218
      %p222 = scmp.eq.s32.totalorder %s19, 0
      %p223 = por %p221, %p222
      %p224 = scmp.ne.s32.totalorder %s216, %s218
      %p225 = scmp.eq.s32.totalorder %s24, 1
      %p226 = por %p224, %p225
      %p227 = scmp.ne.s32.totalorder %s218, %s219
      %p228 = scmp.eq.s32.totalorder %s24, 0
      %p229 = por %p227, %p228
      %p230 = scmp.ne.s32.totalorder %s218, %s219
      %p231 = scmp.eq.s32.totalorder %s25, 1
      %p232 = por %p230, %p231
      %p234 = scmp.ne.s32.totalorder %s219, %s233
      %p235 = scmp.eq.s32.totalorder %s25, 0
      %p236 = por %p234, %p235
      %s238 = sadd.s32 %s237, 1
      %p241 = scmp.eq.s32.totalorder %s19, 1
      %p242 = scmp.ne.s32.totalorder %s237, %s239
      %p243 = scmp.eq.s32.totalorder %s19, 0
      %p244 = por %p242, %p243
      %p245 = scmp.ne.s32.totalorder %s237, %s239
      %p246 = scmp.eq.s32.totalorder %s24, 1
      %p247 = por %p245, %p246
      %p248 = scmp.ne.s32.totalorder %s239, %s240
      %p249 = scmp.eq.s32.totalorder %s24, 0
      %p250 = por %p248, %p249
      %p251 = scmp.ne.s32.totalorder %s239, %s240
      %p252 = scmp.eq.s32.totalorder %s25, 1
      %p253 = por %p251, %p252
      %p255 = scmp.ne.s32.totalorder %s240, %s254
      %p256 = scmp.eq.s32.totalorder %s25, 0
      %p257 = por %p255, %p256
      %s259 = sadd.s32 %s258, 1
      %p262 = scmp.eq.s32.totalorder %s19, 1
      %p263 = scmp.ne.s32.totalorder %s258, %s260
      %p264 = scmp.eq.s32.totalorder %s19, 0
      %p265 = por %p263, %p264
      %p266 = scmp.ne.s32.totalorder %s258, %s260
      %p267 = scmp.eq.s32.totalorder %s24, 1
      %p268 = por %p266, %p267
      %p269 = scmp.ne.s32.totalorder %s260, %s261
      %p270 = scmp.eq.s32.totalorder %s24, 0
      %p271 = por %p269, %p270
      %p272 = scmp.ne.s32.totalorder %s260, %s261
      %p273 = scmp.eq.s32.totalorder %s25, 1
      %p274 = por %p272, %p273
      %p276 = scmp.ne.s32.totalorder %s261, %s275
      %p277 = scmp.eq.s32.totalorder %s25, 0
      %p278 = por %p276, %p277
      %s280 = sadd.s32 %s279, 1
      %p283 = scmp.eq.s32.totalorder %s19, 1
      %p284 = scmp.ne.s32.totalorder %s279, %s281
      %p285 = scmp.eq.s32.totalorder %s19, 0
      %p286 = por %p284, %p285
      %p287 = scmp.ne.s32.totalorder %s279, %s281
      %p288 = scmp.eq.s32.totalorder %s24, 1
      %p289 = por %p287, %p288
      %p290 = scmp.ne.s32.totalorder %s281, %s282
      %p291 = scmp.eq.s32.totalorder %s24, 0
      %p292 = por %p290, %p291
      %p293 = scmp.ne.s32.totalorder %s281, %s282
      %p294 = scmp.eq.s32.totalorder %s25, 1
      %p295 = por %p293, %p294
      %p297 = scmp.ne.s32.totalorder %s282, %s296
      %p298 = scmp.eq.s32.totalorder %s25, 0
      %p299 = por %p297, %p298
      %p300 = scmp.le.s32.totalorder 1, %s19
      %p301 = scmp.lt.s32.totalorder %s19, 3
      %p302 = pnand %p300, %p301
      %p303 = pneg %p302
      // Predicated region
      $region9: #{discrete_gnn2_forward.1} parent=5 // pred_check
        _
      $region10: #{discrete_gnn2_forward.1} parent=5 // pred_check_branch
        %305 = sbr.rel (%p302) target = $region12
      $region11: #{discrete_gnn2_forward.1} parent=5 // pred_region
        %s306 = ssub.s32 %s19, 1
        // Predicated region
        $region13: #{discrete_gnn2_forward.1} parent=11 // pred_check
          %p307 = pneg %p52
        $region14: #{discrete_gnn2_forward.1} parent=11 // pred_check_branch
          %309 = sbr.rel (%p307) target = $region16
        $region15: #{discrete_gnn2_forward.1} parent=11 // pred_region
          _
        $region16: #{discrete_gnn2_forward.1} parent=11 // pred_fallthru
          _
        // Predicated region
        $region17: #{discrete_gnn2_forward.1} parent=11 // pred_check
          %p310 = pneg %p78
        $region18: #{discrete_gnn2_forward.1} parent=11 // pred_check_branch
          %312 = sbr.rel (%p310) target = $region20
        $region19: #{discrete_gnn2_forward.1} parent=11 // pred_region
          %s313 = smul.u32 16, %s29
          %p314 = scmp.lt.s32.totalorder %s313, 15
          %s315 = scalar_select %p314, %s313, 15
          %s316 = smul.addr %s315, 4
          %s317 = scalar_lea.vmem %s1, %s316
          %s318 = smul.u32 16, %s29
        $region20: #{discrete_gnn2_forward.1} parent=11 // pred_fallthru
          _
        // Predicated region
        $region21: #{discrete_gnn2_forward.1} parent=11 // pred_check
          %p319 = pneg %p104
        $region22: #{discrete_gnn2_forward.1} parent=11 // pred_check_branch
          %321 = sbr.rel (%p319) target = $region24
        $region23: #{discrete_gnn2_forward.1} parent=11 // pred_region
          %p322 = scmp.lt.s32.totalorder %s29, 0
          %s323 = scalar_select %p322, %s29, 0
          %s324 = smul.addr %s323, 4
          %s325 = scalar_lea.vmem %s2, %s324
        $region24: #{discrete_gnn2_forward.1} parent=11 // pred_fallthru
          _
        // Predicated region
        $region25: #{discrete_gnn2_forward.1} parent=11 // pred_check
          %p326 = pneg %p229
        $region26: #{discrete_gnn2_forward.1} parent=11 // pred_check_branch
          %328 = sbr.rel (%p326) target = $region28
        $region27: #{discrete_gnn2_forward.1} parent=11 // pred_region
          _
        $region28: #{discrete_gnn2_forward.1} parent=11 // pred_fallthru
          _
        // Predicated region
        $region29: #{discrete_gnn2_forward.1} parent=11 // pred_check
          %p329 = pneg %p250
        $region30: #{discrete_gnn2_forward.1} parent=11 // pred_check_branch
          %331 = sbr.rel (%p329) target = $region32
        $region31: #{discrete_gnn2_forward.1} parent=11 // pred_region
          _
        $region32: #{discrete_gnn2_forward.1} parent=11 // pred_fallthru
          _
      $region12: #{discrete_gnn2_forward.1} parent=5 // pred_fallthru
        _
      %p332 = scmp.lt.s32.totalorder %s19, 2
      // Predicated region
      $region33: #{discrete_gnn2_forward.1} parent=5 // pred_check
        %p333 = pneg %p332
      $region34: #{discrete_gnn2_forward.1} parent=5 // pred_check_branch
        %335 = sbr.rel (%p333) target = $region36
      $region35: #{discrete_gnn2_forward.1} parent=5 // pred_region
        // Predicated region
        $region37: #{discrete_gnn2_forward.1} parent=35 // pred_check
          %p336 = pneg %p124
        $region38: #{discrete_gnn2_forward.1} parent=35 // pred_check_branch
          %338 = sbr.rel (%p336) target = $region40
        $region39: #{discrete_gnn2_forward.1} parent=35 // pred_region
          %p339 = scmp.lt.s32.totalorder %s26, 1
          %s340 = scalar_select %p339, %s26, 1
          %s341 = smul.addr %s340, 16
          %s342 = smul.addr %s341, 4
          %s343 = scalar_lea.vmem %s3, %s342
        $region40: #{discrete_gnn2_forward.1} parent=35 // pred_fallthru
          _
        // Predicated region
        $region41: #{discrete_gnn2_forward.1} parent=35 // pred_check
          %p344 = pneg %p150
        $region42: #{discrete_gnn2_forward.1} parent=35 // pred_check_branch
          %346 = sbr.rel (%p344) target = $region44
        $region43: #{discrete_gnn2_forward.1} parent=35 // pred_region
          %p347 = scmp.lt.s32.totalorder %s26, 1
          %s348 = scalar_select %p347, %s26, 1
          %s349 = smul.addr %s348, 16
          %s350 = smul.addr %s349, 4
          %s351 = scalar_lea.vmem %s4, %s350
        $region44: #{discrete_gnn2_forward.1} parent=35 // pred_fallthru
          _
        // Predicated region
        $region45: #{discrete_gnn2_forward.1} parent=35 // pred_check
          %p352 = pneg %p176
        $region46: #{discrete_gnn2_forward.1} parent=35 // pred_check_branch
          %354 = sbr.rel (%p352) target = $region48
        $region47: #{discrete_gnn2_forward.1} parent=35 // pred_region
          %p355 = scmp.lt.s32.totalorder %s26, 1
          %s356 = scalar_select %p355, %s26, 1
          %s357 = smul.addr %s356, 2
          %s358 = smul.addr %s357, 4
          %s359 = scalar_lea.vmem %s5, %s358
        $region48: #{discrete_gnn2_forward.1} parent=35 // pred_fallthru
          _
        // Predicated region
        $region49: #{discrete_gnn2_forward.1} parent=35 // pred_check
          %p360 = pneg %p202
        $region50: #{discrete_gnn2_forward.1} parent=35 // pred_check_branch
          %362 = sbr.rel (%p360) target = $region52
        $region51: #{discrete_gnn2_forward.1} parent=35 // pred_region
          %p363 = scmp.lt.s32.totalorder %s26, 1
          %s364 = scalar_select %p363, %s26, 1
          %s365 = smul.addr %s364, 4
          %s366 = scalar_lea.vmem %s6, %s365
        $region52: #{discrete_gnn2_forward.1} parent=35 // pred_fallthru
          _
      $region36: #{discrete_gnn2_forward.1} parent=5 // pred_fallthru
        _
      %p367 = scmp.le.s32.totalorder 1, %s19
      %p368 = scmp.lt.s32.totalorder %s19, 3
      %p369 = pnand %p367, %p368
      %p370 = pneg %p369
      // Predicated region
      $region53: #{discrete_gnn2_forward.1} parent=5 // pred_check
        _
      $region54: #{discrete_gnn2_forward.1} parent=5 // pred_check_branch
        %372 = sbr.rel (%p369) target = $region56
      $region55: #{discrete_gnn2_forward.1} parent=5 // pred_region
        %s373 = ssub.s32 %s19, 1
        %p374 = pneg %p52
        %p375 = pneg %p49
        %s376 = smul.u32 16, %s29
        %p377 = scmp.lt.s32.totalorder %s376, 15
        %s378 = scalar_select %p377, %s376, 15
        %s379 = smul.addr %s378, 4
        %s380 = scalar_lea.vmem %s1, %s379
        %p381 = pneg %p78
        %p382 = pneg %p75
        %p383 = scmp.lt.s32.totalorder %s29, 0
        %s384 = scalar_select %p383, %s29, 0
        %s385 = smul.addr %s384, 4
        %s386 = scalar_lea.vmem %s2, %s385
        %p387 = pneg %p104
        %p388 = pneg %p101
        %p389 = scmp.lt.s32.totalorder %s28, 1
        %s390 = scalar_select %p389, %s28, 1
        %s391 = smul.addr %s390, 16
        %s392 = smul.addr %s391, 4
        %s393 = scalar_lea.vmem %s3, %s392
        %p394 = pneg %p130
        %p395 = pneg %p127
        %p396 = scmp.lt.s32.totalorder %s28, 1
        %s397 = scalar_select %p396, %s28, 1
        %s398 = smul.addr %s397, 16
        %s399 = smul.addr %s398, 4
        %s400 = scalar_lea.vmem %s4, %s399
        %p401 = pneg %p156
        %p402 = pneg %p153
        %p403 = scmp.lt.s32.totalorder %s28, 1
        %s404 = scalar_select %p403, %s28, 1
        %s405 = smul.addr %s404, 2
        %s406 = smul.addr %s405, 4
        %s407 = scalar_lea.vmem %s5, %s406
        %p408 = pneg %p182
        %p409 = pneg %p179
        %p410 = scmp.lt.s32.totalorder %s28, 1
        %s411 = scalar_select %p410, %s28, 1
        %s412 = smul.addr %s411, 4
        %s413 = scalar_lea.vmem %s6, %s412
        %p414 = pneg %p208
        %p415 = pneg %p205
        %p416 = pneg %p229
        %p417 = pneg %p226
        %p418 = pneg %p250
        %p419 = pneg %p247
        %p420 = pneg %p271
        %p421 = pneg %p268
        %p422 = pneg %p292
        %p423 = pneg %p289
        %s424 = smul.u32 16, %s29
        %p425 = scmp.lt.s32.totalorder %s424, 15
        %s426 = scalar_select %p425, %s424, 15
        %s427 = smul.addr %s426, 4
        %s428 = scalar_lea.vmem %s1, %s427
        %s429 = smul.u32 16, %s29
        %p430 = scmp.lt.s32.totalorder %s29, 0
        %s431 = scalar_select %p430, %s29, 0
        %s432 = smul.addr %s431, 4
        %s433 = scalar_lea.vmem %s2, %s432
        %p434 = scmp.lt.s32.totalorder %s28, 1
        %s435 = scalar_select %p434, %s28, 1
        %s436 = smul.addr %s435, 16
        %s437 = smul.addr %s436, 4
        %s438 = scalar_lea.vmem %s3, %s437
        %p439 = scmp.lt.s32.totalorder %s28, 1
        %s440 = scalar_select %p439, %s28, 1
        %s441 = smul.addr %s440, 16
        %s442 = smul.addr %s441, 4
        %s443 = scalar_lea.vmem %s4, %s442
        %p444 = scmp.lt.s32.totalorder %s28, 1
        %s445 = scalar_select %p444, %s28, 1
        %s446 = smul.addr %s445, 2
        %s447 = smul.addr %s446, 4
        %s448 = scalar_lea.vmem %s5, %s447
        %p449 = scmp.lt.s32.totalorder %s28, 1
        %s450 = scalar_select %p449, %s28, 1
        %s451 = smul.addr %s450, 4
        %s452 = scalar_lea.vmem %s6, %s451
        %p454 = scmp.eq.s32.totalorder %s29, 0
        // Predicated region
        $region57: #{discrete_gnn2_forward.1} parent=55 // pred_check
          %p455 = pneg %p454
        $region58: #{discrete_gnn2_forward.1} parent=55 // pred_check_branch
          %457 = sbr.rel (%p455) target = $region60
        $region59: #{discrete_gnn2_forward.1} parent=55 // pred_region
          %p458 = scmp.eq.s32.totalorder %s28, 0
          // Predicated region
          $region61: #{discrete_gnn2_forward.1} parent=59 // pred_check
            %p459 = pneg %p458
          $region62: #{discrete_gnn2_forward.1} parent=59 // pred_check_branch
            %461 = sbr.rel (%p459) target = $region64
          $region63: #{discrete_gnn2_forward.1} parent=59 // pred_region
            %v462 = vld [vmem:[%s0] sm:$0xf]
            %v463 = vld [vmem:[%s0 + $0x4] sm:$0xf]
            %v466 = vunpack.c.l.b16 %v462
            %v467 = vunpack.c.l.b16 %v463
            %v468 = vpack.c.b16 %v467, %v466
            %470 = vst [vmem:[#allocation2] sm:$0xff] %v468
          $region64: #{discrete_gnn2_forward.1} parent=59 // pred_fallthru
            _
          %v471 = vld [vmem:[#allocation2] sm:$0xff]
          %472 = vst [vmem:[#allocation3] sm:$0xff] %v471
          %v473 = vld [vmem:[%s448] sm:$0xf]
          %v474 = vld [vmem:[%s448 + $0x4] sm:$0xf]
          %v477 = vunpack.c.l.b16 %v473
          %v478 = vunpack.c.l.b16 %v474
          %v479 = vpack.c.b16 %v478, %v477
          %481 = vst [vmem:[#allocation3 + $0x8] sm:$0xff] %v479
          %482 = vst [vmem:[#allocation4] sm:$0xff] 0.0
          %483 = vst [vmem:[#allocation4 + $0x8] sm:$0xff] 0.0
        $region60: #{discrete_gnn2_forward.1} parent=55 // pred_fallthru
          _
        %v484 = vld [vmem:[%s428] sm:$0xf]
        %v485 = vld [vmem:[%s428 + $0x4] sm:$0xf]
        %v486 = vld [vmem:[%s428 + $0x8] sm:$0xf]
        %v487 = vld [vmem:[%s428 + $0xc] sm:$0xf]
        %v488 = vld [vmem:[%s428 + $0x10] sm:$0xf]
        %v489 = vld [vmem:[%s428 + $0x14] sm:$0xf]
        %v490 = vld [vmem:[%s428 + $0x18] sm:$0xf]
        %v491 = vld [vmem:[%s428 + $0x1c] sm:$0xf]
        %v492 = vld [vmem:[%s428 + $0x20] sm:$0xf]
        %v493 = vld [vmem:[%s428 + $0x24] sm:$0xf]
        %v494 = vld [vmem:[%s428 + $0x28] sm:$0xf]
        %v495 = vld [vmem:[%s428 + $0x2c] sm:$0xf]
        %v496 = vld [vmem:[%s428 + $0x30] sm:$0xf]
        %v497 = vld [vmem:[%s428 + $0x34] sm:$0xf]
        %v498 = vld [vmem:[%s428 + $0x38] sm:$0xf]
        %v499 = vld [vmem:[%s428 + $0x3c] sm:$0xf]
        %v500 = vld [vmem:[#allocation3] sm:$0xff]
        %v501 = vld [vmem:[#allocation3 + $0x8] sm:$0xff]
        %v518 = vunpack.c.l.b16 %v484
        %v519 = vunpack.c.l.b16 %v485
        %v520 = vunpack.c.l.b16 %v486
        %v521 = vunpack.c.l.b16 %v487
        %v522 = vunpack.c.l.b16 %v488
        %v523 = vunpack.c.l.b16 %v489
        %v524 = vunpack.c.l.b16 %v490
        %v525 = vunpack.c.l.b16 %v491
        %v526 = vunpack.c.l.b16 %v492
        %v527 = vunpack.c.l.b16 %v493
        %v528 = vunpack.c.l.b16 %v494
        %v529 = vunpack.c.l.b16 %v495
        %v530 = vunpack.c.l.b16 %v496
        %v531 = vunpack.c.l.b16 %v497
        %v532 = vunpack.c.l.b16 %v498
        %v533 = vunpack.c.l.b16 %v499
        %v534 = vpack.c.b16 %v519, %v518
        %v535 = vpack.c.b16 %v521, %v520
        %v536 = vpack.c.b16 %v523, %v522
        %v537 = vpack.c.b16 %v525, %v524
        %v538 = vpack.c.b16 %v527, %v526
        %v539 = vpack.c.b16 %v529, %v528
        %v540 = vpack.c.b16 %v531, %v530
        %v541 = vpack.c.b16 %v533, %v532
        %vm542 = vcmask 261120
        %v544 = vsel %vm542, %v534, 0
        %v547 = vsel %vm542, %v535, 0
        %v550 = vsel %vm542, %v536, 0
        %v553 = vsel %vm542, %v537, 0
        %v556 = vsel %vm542, %v538, 0
        %v559 = vsel %vm542, %v539, 0
        %v562 = vsel %vm542, %v540, 0
        %v565 = vsel %vm542, %v541, 0
        %567 = vmatprep.subr.bf16.mxu0 0
        %568 = vmatpush1.bf16.msra.mxu0 %v500
        %569 = vmatprep.subr.bf16.mxu0 0
        %570 = vmatpush1.bf16.msra.mxu0 %v501
        %571 = vmatprep.subr.bf16.mxu0 0
        %572 = vmatpush1.bf16.msra.mxu0 0
        %573 = vmatprep.subr.bf16.mxu0 0
        %574 = vmatpush1.bf16.msra.mxu0 0
        %575 = vmatprep.subr.bf16.mxu0 0
        %576 = vmatpush1.bf16.msra.mxu0 0
        %577 = vmatprep.subr.bf16.mxu0 0
        %578 = vmatpush1.bf16.msra.mxu0 0
        %579 = vmatprep.subr.bf16.mxu0 0
        %580 = vmatpush1.bf16.msra.mxu0 0
        %581 = vmatprep.subr.bf16.mxu0 0
        %582 = vmatpush1.bf16.msra.mxu0 0
        %583 = vmatprep.subr.bf16.mxu0 0
        %584 = vmatpush1.bf16.msra.mxu0 0
        %585 = vmatprep.subr.bf16.mxu0 0
        %586 = vmatpush1.bf16.msra.mxu0 0
        %587 = vmatprep.subr.bf16.mxu0 0
        %588 = vmatpush1.bf16.msra.mxu0 0
        %589 = vmatprep.subr.bf16.mxu0 0
        %590 = vmatpush1.bf16.msra.mxu0 0
        %591 = vmatprep.subr.bf16.mxu0 0
        %592 = vmatpush1.bf16.msra.mxu0 0
        %593 = vmatprep.subr.bf16.mxu0 0
        %594 = vmatpush1.bf16.msra.mxu0 0
        %595 = vmatprep.subr.bf16.mxu0 0
        %596 = vmatpush1.bf16.msra.mxu0 0
        %597 = vmatprep.subr.bf16.mxu0 0
        %598 = vmatpush1.bf16.msra.mxu0 0
        %599 = vmatprep.mubr.bf16.mxu0 0
        %600 = vmatmul.mubr.bf16.gmra.mrb[0].mxu0 %v544
        %v601 = vpop.f32.mrb[0].mxu0
        %v602 = vadd.f32 0.0, %v601
        %v603 = vpop.f32.mrb[0].mxu0
        %v604 = vpop.f32.mrb[0].mxu0
        %v605 = vadd.f32 0.0, %v604
        %v606 = vpop.f32.mrb[0].mxu0
        %607 = vmatprep.mubr.bf16.mxu0 0
        %608 = vmatmul.mubr.bf16.gmra.mrb[0].mxu0 %v547
        %v609 = vpop.f32.mrb[0].mxu0
        %v610 = vadd.f32 0.0, %v609
        %v611 = vpop.f32.mrb[0].mxu0
        %v612 = vpop.f32.mrb[0].mxu0
        %v613 = vadd.f32 0.0, %v612
        %v614 = vpop.f32.mrb[0].mxu0
        %615 = vmatprep.mubr.bf16.mxu0 0
        %616 = vmatmul.mubr.bf16.gmra.mrb[0].mxu0 %v550
        %v617 = vpop.f32.mrb[0].mxu0
        %v618 = vadd.f32 0.0, %v617
        %v619 = vpop.f32.mrb[0].mxu0
        %v620 = vpop.f32.mrb[0].mxu0
        %v621 = vadd.f32 0.0, %v620
        %v622 = vpop.f32.mrb[0].mxu0
        %623 = vmatprep.mubr.bf16.mxu0 0
        %624 = vmatmul.mubr.bf16.gmra.mrb[0].mxu0 %v553
        %v625 = vpop.f32.mrb[0].mxu0
        %v626 = vadd.f32 0.0, %v625
        %v627 = vpop.f32.mrb[0].mxu0
        %v628 = vpop.f32.mrb[0].mxu0
        %v629 = vadd.f32 0.0, %v628
        %v630 = vpop.f32.mrb[0].mxu0
        %631 = vmatprep.mubr.bf16.mxu0 0
        %632 = vmatmul.mubr.bf16.gmra.mrb[0].mxu0 %v556
        %v633 = vpop.f32.mrb[0].mxu0
        %v634 = vadd.f32 0.0, %v633
        %v635 = vpop.f32.mrb[0].mxu0
        %v636 = vpop.f32.mrb[0].mxu0
        %v637 = vadd.f32 0.0, %v636
        %v638 = vpop.f32.mrb[0].mxu0
        %639 = vmatprep.mubr.bf16.mxu0 0
        %640 = vmatmul.mubr.bf16.gmra.mrb[0].mxu0 %v559
        %v641 = vpop.f32.mrb[0].mxu0
        %v642 = vadd.f32 0.0, %v641
        %v643 = vpop.f32.mrb[0].mxu0
        %v644 = vpop.f32.mrb[0].mxu0
        %v645 = vadd.f32 0.0, %v644
        %v646 = vpop.f32.mrb[0].mxu0
        %647 = vmatprep.mubr.bf16.mxu0 0
        %648 = vmatmul.mubr.bf16.gmra.mrb[0].mxu0 %v562
        %v649 = vpop.f32.mrb[0].mxu0
        %v650 = vadd.f32 0.0, %v649
        %v651 = vpop.f32.mrb[0].mxu0
        %v652 = vpop.f32.mrb[0].mxu0
        %v653 = vadd.f32 0.0, %v652
        %v654 = vpop.f32.mrb[0].mxu0
        %655 = vmatprep.mubr.bf16.mxu0 0
        %656 = vmatmul.mubr.bf16.gmra.mrb[0].mxu0 %v565
        %v657 = vpop.f32.mrb[0].mxu0
        %v658 = vadd.f32 0.0, %v657
        %v659 = vpop.f32.mrb[0].mxu0
        %v660 = vpop.f32.mrb[0].mxu0
        %v661 = vadd.f32 0.0, %v660
        %v662 = vpop.f32.mrb[0].mxu0
        %663 = vdwg.mxu0
        %v664 = vld [vmem:[#allocation4] sm:$0xff]
        %v665 = vld [vmem:[#allocation4 + $0x8] sm:$0xff]
        %v666 = vld [vmem:[%s433] sm:$0xf]
        %v667 = vld [vmem:[%s433 + $0x4] sm:$0xf]
        %v668 = vpack.c.bf16 %v605, %v602
        %v669 = vpack.c.bf16 %v613, %v610
        %v670 = vpack.c.bf16 %v621, %v618
        %v671 = vpack.c.bf16 %v629, %v626
        %v672 = vpack.c.bf16 %v637, %v634
        %v673 = vpack.c.bf16 %v645, %v642
        %v674 = vpack.c.bf16 %v653, %v650
        %v675 = vpack.c.bf16 %v661, %v658
        %v678 = vunpack.c.l.b16 %v666
        %v679 = vunpack.c.l.b16 %v667
        %v680 = vpack.c.b16 %v679, %v678
        %682 = vmatprep.subr.bf16.mxu0 0
        %683 = vmatpush1.bf16.msra.mxu0 %v668
        %684 = vmatprep.subr.bf16.mxu0 0
        %685 = vmatpush1.bf16.msra.mxu0 %v669
        %686 = vmatprep.subr.bf16.mxu0 0
        %687 = vmatpush1.bf16.msra.mxu0 %v670
        %688 = vmatprep.subr.bf16.mxu0 0
        %689 = vmatpush1.bf16.msra.mxu0 %v671
        %690 = vmatprep.subr.bf16.mxu0 0
        %691 = vmatpush1.bf16.msra.mxu0 %v672
        %692 = vmatprep.subr.bf16.mxu0 0
        %693 = vmatpush1.bf16.msra.mxu0 %v673
        %694 = vmatprep.subr.bf16.mxu0 0
        %695 = vmatpush1.bf16.msra.mxu0 %v674
        %696 = vmatprep.subr.bf16.mxu0 0
        %697 = vmatpush1.bf16.msra.mxu0 %v675
        %698 = vmatprep.subr.bf16.mxu0 0
        %699 = vmatpush1.bf16.msra.mxu0 0
        %700 = vmatprep.subr.bf16.mxu0 0
        %701 = vmatpush1.bf16.msra.mxu0 0
        %702 = vmatprep.subr.bf16.mxu0 0
        %703 = vmatpush1.bf16.msra.mxu0 0
        %704 = vmatprep.subr.bf16.mxu0 0
        %705 = vmatpush1.bf16.msra.mxu0 0
        %706 = vmatprep.subr.bf16.mxu0 0
        %707 = vmatpush1.bf16.msra.mxu0 0
        %708 = vmatprep.subr.bf16.mxu0 0
        %709 = vmatpush1.bf16.msra.mxu0 0
        %710 = vmatprep.subr.bf16.mxu0 0
        %711 = vmatpush1.bf16.msra.mxu0 0
        %712 = vmatprep.subr.bf16.mxu0 0
        %713 = vmatpush1.bf16.msra.mxu0 0
        %714 = vmatprep.mubr.bf16.mxu0 0
        %715 = vmatmul.mubr.bf16.gmra.mrb[0].mxu0 %v680
        %v716 = vpop.f32.mrb[0].mxu0
        %v717 = vadd.f32 0.0, %v716
        %v718 = vpop.f32.mrb[0].mxu0
        %v719 = vpop.f32.mrb[0].mxu0
        %v720 = vadd.f32 0.0, %v719
        %v721 = vpop.f32.mrb[0].mxu0
        %722 = vdwg.mxu0
        %v723 = vadd.f32 %v664, %v717
        %v724 = vadd.f32 %v665, %v720
        %725 = vst [vmem:[#allocation4] sm:$0xff] %v723
        %726 = vst [vmem:[#allocation4 + $0x8] sm:$0xff] %v724
        // Predicated region
        $region65: #{discrete_gnn2_forward.1} parent=55 // pred_check
          %p727 = pneg %p454
        $region66: #{discrete_gnn2_forward.1} parent=55 // pred_check_branch
          %729 = sbr.rel (%p727) target = $region68
        $region67: #{discrete_gnn2_forward.1} parent=55 // pred_region
          %v730 = vld [vmem:[%s452] sm:$0xf]
          %v731 = vld [vmem:[#allocation4] sm:$0xff]
          %v732 = vld [vmem:[#allocation4 + $0x8] sm:$0xff]
          %v733 = vpack.c.bf16 %v732, %v731
          %v734 = vld [vmem:[%s438] sm:$0xf]
          %v735 = vld [vmem:[%s438 + $0x4] sm:$0xf]
          %v736 = vld [vmem:[%s438 + $0x8] sm:$0xf]
          %v737 = vld [vmem:[%s438 + $0xc] sm:$0xf]
          %v738 = vld [vmem:[%s438 + $0x10] sm:$0xf]
          %v739 = vld [vmem:[%s438 + $0x14] sm:$0xf]
          %v740 = vld [vmem:[%s438 + $0x18] sm:$0xf]
          %v741 = vld [vmem:[%s438 + $0x1c] sm:$0xf]
          %v742 = vld [vmem:[%s438 + $0x20] sm:$0xf]
          %v743 = vld [vmem:[%s438 + $0x24] sm:$0xf]
          %v744 = vld [vmem:[%s438 + $0x28] sm:$0xf]
          %v745 = vld [vmem:[%s438 + $0x2c] sm:$0xf]
          %v746 = vld [vmem:[%s438 + $0x30] sm:$0xf]
          %v747 = vld [vmem:[%s438 + $0x34] sm:$0xf]
          %v748 = vld [vmem:[%s438 + $0x38] sm:$0xf]
          %v749 = vld [vmem:[%s438 + $0x3c] sm:$0xf]
          %v750 = vlaneseq
          %v751 = vshrl.u32 %v750, 7
          %v752 = vsub.s32 0, %v751
          %v753 = vrot.slane %v730, %v752
          %v770 = vunpack.c.l.b16 %v734
          %v771 = vunpack.c.l.b16 %v735
          %v772 = vunpack.c.l.b16 %v736
          %v773 = vunpack.c.l.b16 %v737
          %v774 = vunpack.c.l.b16 %v738
          %v775 = vunpack.c.l.b16 %v739
          %v776 = vunpack.c.l.b16 %v740
          %v777 = vunpack.c.l.b16 %v741
          %v778 = vunpack.c.l.b16 %v742
          %v779 = vunpack.c.l.b16 %v743
          %v780 = vunpack.c.l.b16 %v744
          %v781 = vunpack.c.l.b16 %v745
          %v782 = vunpack.c.l.b16 %v746
          %v783 = vunpack.c.l.b16 %v747
          %v784 = vunpack.c.l.b16 %v748
          %v785 = vunpack.c.l.b16 %v749
          %v786 = vpack.c.b16 %v771, %v770
          %v787 = vpack.c.b16 %v773, %v772
          %v788 = vpack.c.b16 %v775, %v774
          %v789 = vpack.c.b16 %v777, %v776
          %v790 = vpack.c.b16 %v779, %v778
          %v791 = vpack.c.b16 %v781, %v780
          %v792 = vpack.c.b16 %v783, %v782
          %v793 = vpack.c.b16 %v785, %v784
          %802 = vmatprep.subr.bf16.mxu0 0
          %803 = vmatpush1.bf16.msra.mxu0 %v786
          %804 = vmatprep.subr.bf16.mxu0 0
          %805 = vmatpush1.bf16.msra.mxu0 %v787
          %806 = vmatprep.subr.bf16.mxu0 0
          %807 = vmatpush1.bf16.msra.mxu0 %v788
          %808 = vmatprep.subr.bf16.mxu0 0
          %809 = vmatpush1.bf16.msra.mxu0 %v789
          %810 = vmatprep.subr.bf16.mxu0 0
          %811 = vmatpush1.bf16.msra.mxu0 %v790
          %812 = vmatprep.subr.bf16.mxu0 0
          %813 = vmatpush1.bf16.msra.mxu0 %v791
          %814 = vmatprep.subr.bf16.mxu0 0
          %815 = vmatpush1.bf16.msra.mxu0 %v792
          %816 = vmatprep.subr.bf16.mxu0 0
          %817 = vmatpush1.bf16.msra.mxu0 %v793
          %818 = vmatprep.subr.bf16.mxu0 0
          %819 = vmatpush1.bf16.msra.mxu0 0
          %820 = vmatprep.subr.bf16.mxu0 0
          %821 = vmatpush1.bf16.msra.mxu0 0
          %822 = vmatprep.subr.bf16.mxu0 0
          %823 = vmatpush1.bf16.msra.mxu0 0
          %824 = vmatprep.subr.bf16.mxu0 0
          %825 = vmatpush1.bf16.msra.mxu0 0
          %826 = vmatprep.subr.bf16.mxu0 0
          %827 = vmatpush1.bf16.msra.mxu0 0
          %828 = vmatprep.subr.bf16.mxu0 0
          %829 = vmatpush1.bf16.msra.mxu0 0
          %830 = vmatprep.subr.bf16.mxu0 0
          %831 = vmatpush1.bf16.msra.mxu0 0
          %832 = vmatprep.subr.bf16.mxu0 0
          %833 = vmatpush1.bf16.msra.mxu0 0
          %834 = vmatprep.mubr.bf16.mxu0 0
          %835 = vmatmul.mubr.bf16.gmra.mrb[0].mxu0 %v733
          %v836 = vpop.f32.mrb[0].mxu0
          %v837 = vadd.f32 %v753, %v836
          %v838 = vpop.f32.mrb[0].mxu0
          %v839 = vpop.f32.mrb[0].mxu0
          %v840 = vadd.f32 %v753, %v839
          %v841 = vpop.f32.mrb[0].mxu0
          %842 = vdwg.mxu0
          %v843 = vmax.f32 %v837, 0.0
          %v844 = vmax.f32 %v840, 0.0
          %v845 = vpack.c.bf16 %v844, %v843
          %v846 = vld [vmem:[%s443] sm:$0xf]
          %v847 = vld [vmem:[%s443 + $0x4] sm:$0xf]
          %v848 = vld [vmem:[%s443 + $0x8] sm:$0xf]
          %v849 = vld [vmem:[%s443 + $0xc] sm:$0xf]
          %v850 = vld [vmem:[%s443 + $0x10] sm:$0xf]
          %v851 = vld [vmem:[%s443 + $0x14] sm:$0xf]
          %v852 = vld [vmem:[%s443 + $0x18] sm:$0xf]
          %v853 = vld [vmem:[%s443 + $0x1c] sm:$0xf]
          %v854 = vld [vmem:[%s443 + $0x20] sm:$0xf]
          %v855 = vld [vmem:[%s443 + $0x24] sm:$0xf]
          %v856 = vld [vmem:[%s443 + $0x28] sm:$0xf]
          %v857 = vld [vmem:[%s443 + $0x2c] sm:$0xf]
          %v858 = vld [vmem:[%s443 + $0x30] sm:$0xf]
          %v859 = vld [vmem:[%s443 + $0x34] sm:$0xf]
          %v860 = vld [vmem:[%s443 + $0x38] sm:$0xf]
          %v861 = vld [vmem:[%s443 + $0x3c] sm:$0xf]
          %v862 = vlaneseq
          %v863 = vshrl.u32 %v862, 7
          %v864 = vsub.s32 1, %v863
          %v865 = vrot.slane %v730, %v864
          %v882 = vunpack.c.l.b16 %v846
          %v883 = vunpack.c.l.b16 %v847
          %v884 = vunpack.c.l.b16 %v848
          %v885 = vunpack.c.l.b16 %v849
          %v886 = vunpack.c.l.b16 %v850
          %v887 = vunpack.c.l.b16 %v851
          %v888 = vunpack.c.l.b16 %v852
          %v889 = vunpack.c.l.b16 %v853
          %v890 = vunpack.c.l.b16 %v854
          %v891 = vunpack.c.l.b16 %v855
          %v892 = vunpack.c.l.b16 %v856
          %v893 = vunpack.c.l.b16 %v857
          %v894 = vunpack.c.l.b16 %v858
          %v895 = vunpack.c.l.b16 %v859
          %v896 = vunpack.c.l.b16 %v860
          %v897 = vunpack.c.l.b16 %v861
          %v898 = vpack.c.b16 %v883, %v882
          %v899 = vpack.c.b16 %v885, %v884
          %v900 = vpack.c.b16 %v887, %v886
          %v901 = vpack.c.b16 %v889, %v888
          %v902 = vpack.c.b16 %v891, %v890
          %v903 = vpack.c.b16 %v893, %v892
          %v904 = vpack.c.b16 %v895, %v894
          %v905 = vpack.c.b16 %v897, %v896
          %914 = vmatprep.subr.bf16.mxu0 0
          %915 = vmatpush1.bf16.msra.mxu0 %v898
          %916 = vmatprep.subr.bf16.mxu0 0
          %917 = vmatpush1.bf16.msra.mxu0 %v899
          %918 = vmatprep.subr.bf16.mxu0 0
          %919 = vmatpush1.bf16.msra.mxu0 %v900
          %920 = vmatprep.subr.bf16.mxu0 0
          %921 = vmatpush1.bf16.msra.mxu0 %v901
          %922 = vmatprep.subr.bf16.mxu0 0
          %923 = vmatpush1.bf16.msra.mxu0 %v902
          %924 = vmatprep.subr.bf16.mxu0 0
          %925 = vmatpush1.bf16.msra.mxu0 %v903
          %926 = vmatprep.subr.bf16.mxu0 0
          %927 = vmatpush1.bf16.msra.mxu0 %v904
          %928 = vmatprep.subr.bf16.mxu0 0
          %929 = vmatpush1.bf16.msra.mxu0 %v905
          %930 = vmatprep.subr.bf16.mxu0 0
          %931 = vmatpush1.bf16.msra.mxu0 0
          %932 = vmatprep.subr.bf16.mxu0 0
          %933 = vmatpush1.bf16.msra.mxu0 0
          %934 = vmatprep.subr.bf16.mxu0 0
          %935 = vmatpush1.bf16.msra.mxu0 0
          %936 = vmatprep.subr.bf16.mxu0 0
          %937 = vmatpush1.bf16.msra.mxu0 0
          %938 = vmatprep.subr.bf16.mxu0 0
          %939 = vmatpush1.bf16.msra.mxu0 0
          %940 = vmatprep.subr.bf16.mxu0 0
          %941 = vmatpush1.bf16.msra.mxu0 0
          %942 = vmatprep.subr.bf16.mxu0 0
          %943 = vmatpush1.bf16.msra.mxu0 0
          %944 = vmatprep.subr.bf16.mxu0 0
          %945 = vmatpush1.bf16.msra.mxu0 0
          %946 = vmatprep.mubr.bf16.mxu0 0
          %947 = vmatmul.mubr.bf16.gmra.mrb[0].mxu0 %v845
          %v948 = vpop.f32.mrb[0].mxu0
          %v949 = vadd.f32 %v865, %v948
          %v950 = vpop.f32.mrb[0].mxu0
          %v951 = vpop.f32.mrb[0].mxu0
          %v952 = vadd.f32 %v865, %v951
          %v953 = vpop.f32.mrb[0].mxu0
          %954 = vdwg.mxu0
          %v955 = vadd.f32 %v949, %v952
          %v956 = vrot.slane %v955, 4
          %v957 = vadd.f32 %v955, %v956
          %v958 = vrot.slane %v957, 2
          %v959 = vadd.f32 %v957, %v958
          %v960 = vrot.slane %v959, 1
          %v961 = vadd.f32 %v959, %v960
          %v962 = vmul.f32 %v961, 0.0625
          %v963 = vsub.f32 %v949, %v962
          %v964 = vsub.f32 %v952, %v962
          %v965 = vmul.f32 %v963, %v963
          %v966 = vmul.f32 %v964, %v964
          %v967 = vadd.f32 %v965, %v966
          %v968 = vrot.slane %v967, 4
          %v969 = vadd.f32 %v967, %v968
          %v970 = vrot.slane %v969, 2
          %v971 = vadd.f32 %v969, %v970
          %v972 = vrot.slane %v971, 1
          %v973 = vadd.f32 %v971, %v972
          %v974 = vmul.f32 %v973, 0.0625
          %v975 = vadd.f32 %v974, 1e-05
          %v976 = vrsqrt.pop %v975
          %v977 = vmul.f32 %v963, %v976
          %v978 = vmul.f32 %v964, %v976
          %v979 = vlaneseq
          %v980 = vshrl.u32 %v979, 7
          %v981 = vsub.s32 2, %v980
          %v982 = vrot.slane %v730, %v981
          %v983 = vmul.f32 %v977, %v982
          %v984 = vmul.f32 %v978, %v982
          %v985 = vlaneseq
          %v986 = vshrl.u32 %v985, 7
          %v987 = vsub.s32 3, %v986
          %v988 = vrot.slane %v730, %v987
          %v989 = vadd.f32 %v983, %v988
          %v990 = vadd.f32 %v984, %v988
          %p991 = scmp.eq.s32.totalorder %s28, 1
          %v992 = vmax.f32 %v989, 0.0
          %v993 = vmax.f32 %v990, 0.0
          %s994 = scalar_select %p991, 1, 0
          %v995 = vstv %s994
          %vm996 = vcmp.eq.s32.totalorder %v995, 1
          %v997 = vsel %vm996, %v989, %v992
          %v998 = vsel %vm996, %v990, %v993
          %v999 = vpack.c.bf16 %v998, %v997
          %1000 = vst [vmem:[#allocation2] sm:$0xff] %v999
          // Predicated region
          $region69: #{discrete_gnn2_forward.1} parent=67 // pred_check
            %p1001 = pneg %p991
          $region70: #{discrete_gnn2_forward.1} parent=67 // pred_check_branch
            %1003 = sbr.rel (%p1001) target = $region72
          $region71: #{discrete_gnn2_forward.1} parent=67 // pred_region
            %1004 = vst [vmem:[#allocation5] sm:$0xff] %v997
            %1005 = vst [vmem:[#allocation5 + $0x8] sm:$0xff] %v998
            %v1006 = vld [vmem:[%s7] sm:$0x1]
            %vm1007 = vcmask 130048
            %v1009 = vsel %vm1007, %v1006, 0
            %1011 = vmatprep.subr.bf16.mxu0 0
            %1012 = vmatpush1.bf16.msra.mxu0 %v999
            %1013 = vmatprep.subr.bf16.mxu0 0
            %1014 = vmatpush1.bf16.msra.mxu0 0
            %1015 = vmatprep.subr.bf16.mxu0 0
            %1016 = vmatpush1.bf16.msra.mxu0 0
            %1017 = vmatprep.subr.bf16.mxu0 0
            %1018 = vmatpush1.bf16.msra.mxu0 0
            %1019 = vmatprep.subr.bf16.mxu0 0
            %1020 = vmatpush1.bf16.msra.mxu0 0
            %1021 = vmatprep.subr.bf16.mxu0 0
            %1022 = vmatpush1.bf16.msra.mxu0 0
            %1023 = vmatprep.subr.bf16.mxu0 0
            %1024 = vmatpush1.bf16.msra.mxu0 0
            %1025 = vmatprep.subr.bf16.mxu0 0
            %1026 = vmatpush1.bf16.msra.mxu0 0
            %1027 = vmatprep.subr.bf16.mxu0 0
            %1028 = vmatpush1.bf16.msra.mxu0 0
            %1029 = vmatprep.subr.bf16.mxu0 0
            %1030 = vmatpush1.bf16.msra.mxu0 0
            %1031 = vmatprep.subr.bf16.mxu0 0
            %1032 = vmatpush1.bf16.msra.mxu0 0
            %1033 = vmatprep.subr.bf16.mxu0 0
            %1034 = vmatpush1.bf16.msra.mxu0 0
            %1035 = vmatprep.subr.bf16.mxu0 0
            %1036 = vmatpush1.bf16.msra.mxu0 0
            %1037 = vmatprep.subr.bf16.mxu0 0
            %1038 = vmatpush1.bf16.msra.mxu0 0
            %1039 = vmatprep.subr.bf16.mxu0 0
            %1040 = vmatpush1.bf16.msra.mxu0 0
            %1041 = vmatprep.subr.bf16.mxu0 0
            %1042 = vmatpush1.bf16.msra.mxu0 0
            %1043 = vmatprep.mubr.bf16.mxu0 0
            %1044 = vmatmul.mubr.bf16.gmra.mrb[0].mxu0 %v1009
            %v1045 = vpop.f32.mrb[0].mxu0
            %v1046 = vadd.f32 0.0, %v1045
            %v1047 = vpop.f32.mrb[0].mxu0
            %v1048 = vpop.f32.mrb[0].mxu0
            %v1049 = vpop.f32.mrb[0].mxu0
            %1050 = vdwg.mxu0
            %v1051 = vld [vmem:[%s8] sm:$0x3]
            %1053 = vset.pattern.permute.xlu0 0
            %1054 = vperm.xlu0 %1053, %v1051
            %v1055 = vpop.permute.xlu0 %1054
            %v1057 = vmul.f32 %v1046, %v1055
            %1058 = vst [vmem:[#allocation7] sm:$0x3] %v1057
          $region72: #{discrete_gnn2_forward.1} parent=67 // pred_fallthru
            _
        $region68: #{discrete_gnn2_forward.1} parent=55 // pred_fallthru
          _
        // Predicated region
        $region73: #{discrete_gnn2_forward.1} parent=55 // pred_check
          %p1059 = pneg %p268
        $region74: #{discrete_gnn2_forward.1} parent=55 // pred_check_branch
          %1061 = sbr.rel (%p1059) target = $region76
        $region75: #{discrete_gnn2_forward.1} parent=55 // pred_region
          %s1063 = ssub.s32 256, 256
          %1064 = vsyncadd [#allocation6], %s1063
          %s1065 = sshll.u32 [#allocation5], 4
          %s1066 = int_to_ptr.vmem [resolvable:$true] %s1065
          %1071 = dma.vmem_to_hbm [thread:$0]  %s1066, 256, %s9, [#allocation6], 128, 128, 8
        $region76: #{discrete_gnn2_forward.1} parent=55 // pred_fallthru
          _
        // Predicated region
        $region77: #{discrete_gnn2_forward.1} parent=55 // pred_check
          %p1072 = pneg %p289
        $region78: #{discrete_gnn2_forward.1} parent=55 // pred_check_branch
          %1074 = sbr.rel (%p1072) target = $region80
        $region79: #{discrete_gnn2_forward.1} parent=55 // pred_region
          %s1076 = ssub.s32 32, 32
          %1077 = vsyncadd [#allocation8], %s1076
          %s1079 = sshll.u32 [#allocation7], 4
          %s1080 = int_to_ptr.vmem [resolvable:$true] %s1079
          %1082 = dma.vmem_to_hbm [thread:$0]  %s1080, 32, %s10, [#allocation8]
        $region80: #{discrete_gnn2_forward.1} parent=55 // pred_fallthru
          _
        // Predicated region
        $region81: #{discrete_gnn2_forward.1} parent=55 // pred_check
          %p1083 = pneg %p268
        $region82: #{discrete_gnn2_forward.1} parent=55 // pred_check_branch
          %1085 = sbr.rel (%p1083) target = $region84
        $region83: #{discrete_gnn2_forward.1} parent=55 // pred_region
          %1086 = dma.done [#allocation6], 256
        $region84: #{discrete_gnn2_forward.1} parent=55 // pred_fallthru
          _
        // Predicated region
        $region85: #{discrete_gnn2_forward.1} parent=55 // pred_check
          %p1087 = pneg %p289
        $region86: #{discrete_gnn2_forward.1} parent=55 // pred_check_branch
          %1089 = sbr.rel (%p1087) target = $region88
        $region87: #{discrete_gnn2_forward.1} parent=55 // pred_region
          %1090 = dma.done [#allocation8], 32
        $region88: #{discrete_gnn2_forward.1} parent=55 // pred_fallthru
          _
      $region56: #{discrete_gnn2_forward.1} parent=5 // pred_fallthru
        _
      %p1091 = scmp.le.s32.totalorder 2, %s19
      // Predicated region
      $region89: #{discrete_gnn2_forward.1} parent=5 // pred_check
        %p1092 = pneg %p1091
      $region90: #{discrete_gnn2_forward.1} parent=5 // pred_check_branch
        %1094 = sbr.rel (%p1092) target = $region92
      $region91: #{discrete_gnn2_forward.1} parent=5 // pred_region
        %s1095 = ssub.s32 %s19, 2
      $region92: #{discrete_gnn2_forward.1} parent=5 // pred_fallthru
        _
    $region6: #{discrete_gnn2_forward.1} parent=1 // loop_footer
      %s23 = sadd.s32 1, %s19
    $region7: #{discrete_gnn2_forward.1} parent=1 // loop_footer_branch
      %18 = sbr.rel target = $region3
    $region8: #{discrete_gnn2_forward.1} parent=1 // loop_exit
      _
    %1096 = vsyncpa [#allocation6], 1
    %s1097 = scalar_lea.sflag [#allocation6], 1
    %1098 = vsyncpa %s1097, 1
    %1099 = vsyncpa [#allocation8], 1

</llo_original>
